<compile_context>
chip_gen: v7x
topology: tpu7x:2x2x1
jax: 0.10.0
libtpu: 0.0.40
codegen_flags: <defaults>
</compile_context>

<pallas_src>
import math

import jax
import jax.numpy as jnp
from jax.experimental import pallas as pl
from jax.experimental.pallas import tpu as pltpu  # noqa: F401  (kept for parity)

# ----------------------------- model sizes -----------------------------------
B = 2          # batch
S_SRC = 8      # source sequence length
S_TGT = 8      # target sequence length
D = 32         # d_model
F = 64         # d_ff
VOCAB = 16
EPS = 1e-6
N = B * S_SRC  # flattened tokens per stream (== B * S_TGT)
assert B * S_TGT == N

# --------------------- packed-operand layout constants ------------------------
# data blob: (2, N, 64)   stream 0 = encoder/src, stream 1 = decoder/tgt
C_OH = 0                    # cols [0, VOCAB+N): augmented one-hot [onehot(ids) | I_N]
C_BIAS = VOCAB + N          # cols [32, 48): self-attn additive bias (0 / -1e9)
C_XBIAS = C_BIAS + N        # cols [48, 64): cross-attn additive bias (stream 1 only)
DATA_COLS = C_XBIAS + N     # 64

# wpair blob: (2, 200, 96) -- per-stream paired weights / LN params / fused table
R_TAB = 0                   # (VOCAB+N, D): [sqrt(D)*emb_table ; PE_flat]
R_QKV = R_TAB + VOCAB + N   # 32 : (D, 3D) packed  Wq/sqrt(D) | Wk | Wv
R_WO = R_QKV + D            # 64 : (D, D) self-attn output projection
R_W1 = R_WO + D             # 96 : (D, F)
R_W2 = R_W1 + D             # 128: (F, D)
R_B1 = R_W2 + F             # 192: (1, F)
R_B2 = R_B1 + 1             # 193: (1, D)
R_GA = R_B2 + 1             # 194: pre-self-attn LN gamma
R_BA = R_GA + 1             # 195: pre-self-attn LN beta
R_GF = R_BA + 1             # 196: pre-FFN LN gamma
R_BF = R_GF + 1             # 197: pre-FFN LN beta
R_GO = R_BF + 1             # 198: final LN gamma (enc memory-norm / dec output-norm)
R_BO = R_GO + 1             # 199: final LN beta
PAIR_ROWS = R_BO + 1        # 200
PAIR_COLS = 3 * D           # 96

# wcross blob: (104, 64) -- decoder cross-attention weights + its pre-LN
X_WQ = 0                    # (D, D), scaled by 1/sqrt(D)
X_WKV = X_WQ + D            # (D, 2D) packed Wk | Wv
X_WO = X_WKV + D            # (D, D)
X_G4 = X_WO + D             # (1, D) LN gamma
X_B4 = X_G4 + 1             # (1, D) LN beta
CROSS_ROWS = 104
CROSS_COLS = 2 * D          # 64


# ----------------------------- Pallas kernel ---------------------------------
def encoder_decoder_kernel(data_ref, wpair_ref, wcross_ref, out_ref):
    def layer_norm(x, g, b):
        mu = jnp.mean(x, axis=-1, keepdims=True)
        xc = x - mu
        var = jnp.mean(xc * xc, axis=-1, keepdims=True)
        return g * xc * jax.lax.rsqrt(var + EPS) + b

    def softmax(s):
        s = s - jnp.max(s, axis=-1, keepdims=True)
        p = jnp.exp(s)
        return p * pl.reciprocal(jnp.sum(p, axis=-1, keepdims=True), approx=True)

    def bdot(a, b):  # stream-paired matmul: (2,m,k) x (2,k,n) -> (2,m,n)
        return jax.lax.dot_general(a, b, (((2,), (1,)), ((0,), (0,))),
                                   preferred_element_type=jnp.float32)

    def ffn(h, i):
        w1 = wpair_ref[i, R_W1:R_W1 + D, 0:F]
        b1 = wpair_ref[i, R_B1:R_B1 + 1, 0:F]
        w2 = wpair_ref[i, R_W2:R_W2 + F, 0:D]
        b2 = wpair_ref[i, R_B2:R_B2 + 1, 0:D]
        z = jnp.maximum(jnp.dot(h, w1, preferred_element_type=jnp.float32) + b1, 0.0)
        return jnp.dot(z, w2, preferred_element_type=jnp.float32) + b2

    def ln_rows(x, i, gr, br):
        return layer_norm(x, wpair_ref[i, gr:gr + 1, 0:D], wpair_ref[i, br:br + 1, 0:D])

    # ----- batched portion: encoder stream (0) + decoder self-attn stream (1) -----
    onehot = data_ref[:, :, C_OH:C_OH + VOCAB + N]          # (2, N, VOCAB+N)
    self_bias = data_ref[:, :, C_BIAS:C_BIAS + N]           # (2, N, N) additive 0/-1e9
    table = wpair_ref[:, R_TAB:R_TAB + VOCAB + N, 0:D]      # (2, VOCAB+N, D)

    # sqrt(D)*embedding-lookup + positional encoding in a single MXU push per stream
    x = bdot(onehot, table)                                 # (2, N, D)

    h = layer_norm(x, wpair_ref[:, R_GA:R_GA + 1, 0:D],
                   wpair_ref[:, R_BA:R_BA + 1, 0:D])
    qkv = bdot(h, wpair_ref[:, R_QKV:R_QKV + D, 0:3 * D])   # (2, N, 3D); 1/sqrt(D) in Wq
    q, k, v = qkv[..., 0:D], qkv[..., D:2 * D], qkv[..., 2 * D:3 * D]

    # scores without materializing k.T (contract last dims directly)
    s = jax.lax.dot_general(q, k, (((2,), (2,)), ((0,), (0,))),
                            preferred_element_type=jnp.float32)      # (2, N, N)
    a = bdot(softmax(s + self_bias), v)                              # (2, N, D)
    x = x + bdot(a, wpair_ref[:, R_WO:R_WO + D, 0:D])                # residual

    # ----- encoder tail: FFN + final norm -> memory -----
    xe = x[0]
    xe = xe + ffn(ln_rows(xe, 0, R_GF, R_BF), 0)
    memory = ln_rows(xe, 0, R_GO, R_BO)                              # (N, D)

    # ----- decoder tail: cross-attention + FFN + final norm -----
    yd = x[1]
    hd = layer_norm(yd, wcross_ref[X_G4:X_G4 + 1, 0:D], wcross_ref[X_B4:X_B4 + 1, 0:D])
    qx = jnp.dot(hd, wcross_ref[X_WQ:X_WQ + D, 0:D],
                 preferred_element_type=jnp.float32)                 # (N, D)
    kv = jnp.dot(memory, wcross_ref[X_WKV:X_WKV + D, 0:2 * D],
                 preferred_element_type=jnp.float32)                 # (N, 2D)
    sx = jax.lax.dot_general(qx, kv[:, 0:D], (((1,), (1,)), ((), ())),
                             preferred_element_type=jnp.float32)     # (N, N)
    px = softmax(sx + data_ref[1, :, C_XBIAS:C_XBIAS + N])
    ax = jnp.dot(px, kv[:, D:2 * D], preferred_element_type=jnp.float32)
    yd = yd + jnp.dot(ax, wcross_ref[X_WO:X_WO + D, 0:D],
                      preferred_element_type=jnp.float32)

    yd = yd + ffn(ln_rows(yd, 1, R_GF, R_BF), 1)
    # NOTE: output last dim is D=32 (<128 lanes) -> masked stores; negligible at
    # this size, revisit if the model grows (keep last dim a multiple of 128 then).
    out_ref[...] = ln_rows(yd, 1, R_GO, R_BO)


def encoder_decoder_pallas(data, wpair, wcross):
    out = pl.pallas_call(
        encoder_decoder_kernel,
        out_shape=jax.ShapeDtypeStruct((N, D), jnp.float32),
        # No grid: single step, whole-array resident in VMEM (< 200 KiB total,
        # far below even the v7x 64 MiB budget).
    )(data, wpair, wcross)
    return out.reshape(B, S_TGT, D)


# ----------------------------- host-side glue ---------------------------------
def sinusoidal_pe(seq_len, d_model):
    pos = jnp.arange(seq_len, dtype=jnp.float32)[:, None]
    i = jnp.arange(0, d_model, 2, dtype=jnp.float32)[None, :]
    div = jnp.exp(-i * (math.log(10000.0) / d_model))
    pe = jnp.zeros((seq_len, d_model), jnp.float32)
    pe = pe.at[:, 0::2].set(jnp.sin(pos * div))
    pe = pe.at[:, 1::2].set(jnp.cos(pos * div))
    return pe


def block_diag(mask_b):
    """(B, Sq, Sk) per-batch mask -> (B*Sq, B*Sk) block-diagonal mask."""
    nb, sq, sk = mask_b.shape
    out = jnp.zeros((nb * sq, nb * sk), jnp.float32)
    for b in range(nb):
        out = out.at[b * sq:(b + 1) * sq, b * sk:(b + 1) * sk].set(mask_b[b])
    return out


def init_params(key):
    ks = jax.random.split(key, 5)
    scale = 0.05
    wdd = scale * jax.random.normal(ks[0], (12, D, D), jnp.float32)
    w1 = scale * jax.random.normal(ks[1], (2, D, F), jnp.float32)
    b1 = jnp.zeros((2, 1, F), jnp.float32)
    w2 = scale * jax.random.normal(ks[2], (2, F, D), jnp.float32)
    b2 = jnp.zeros((2, 1, D), jnp.float32)
    g = jnp.ones((7, 1, D), jnp.float32)
    bt = jnp.zeros((7, 1, D), jnp.float32)
    src_tab = scale * jax.random.normal(ks[3], (VOCAB, D), jnp.float32)
    tgt_tab = scale * jax.random.normal(ks[4], (VOCAB, D), jnp.float32)
    return (wdd, w1, b1, w2, b2, g, bt), src_tab, tgt_tab


def pack_data(source, target, source_mask, target_mask):
    """Build the per-call data blob: augmented one-hots + additive bias masks."""
    def aug_onehot(tok_flat):
        oh = (tok_flat[:, None] == jnp.arange(VOCAB, dtype=jnp.int32)[None, :])
        return jnp.concatenate([oh.astype(jnp.float32),
                                jnp.eye(N, dtype=jnp.float32)], axis=1)  # (N, VOCAB+N)

    to_bias = lambda m: (m - 1.0) * 1e9          # 1 -> 0, 0 -> -1e9
    enc_mask = block_diag(jnp.broadcast_to(source_mask, (B, S_SRC, S_SRC)))
    dec_mask = block_diag(target_mask)
    xmask = block_diag(jnp.broadcast_to(source_mask, (B, S_TGT, S_SRC)))

    data = jnp.zeros((2, N, DATA_COLS), jnp.float32)
    data = data.at[0, :, C_OH:C_OH + VOCAB + N].set(aug_onehot(source.reshape(-1)))
    data = data.at[1, :, C_OH:C_OH + VOCAB + N].set(aug_onehot(target.reshape(-1)))
    data = data.at[0, :, C_BIAS:C_BIAS + N].set(to_bias(enc_mask))
    data = data.at[1, :, C_BIAS:C_BIAS + N].set(to_bias(dec_mask))
    data = data.at[1, :, C_XBIAS:C_XBIAS + N].set(to_bias(xmask))
    return data


def pack_wpair(params, src_tab, tgt_tab):
    """Per-stream paired weights blob; 1/sqrt(D) folded into Wq, sqrt(D) into tables."""
    wdd, w1, b1, w2, b2, g, bt = params
    inv = jnp.float32(1.0 / math.sqrt(D))
    sq = jnp.float32(math.sqrt(D))
    pe_flat = jnp.tile(sinusoidal_pe(S_SRC, D), (B, 1))          # (N, D)

    tabs = [src_tab, tgt_tab]
    qkv_idx = [(0, 1, 2), (4, 5, 6)]
    wo_idx = [3, 7]
    ln_a, ln_f, ln_o = [0, 3], [1, 5], [2, 6]

    wpair = jnp.zeros((2, PAIR_ROWS, PAIR_COLS), jnp.float32)
    for i in range(2):
        tab_aug = jnp.concatenate([tabs[i] * sq, pe_flat], axis=0)        # (VOCAB+N, D)
        qi, ki, vi = qkv_idx[i]
        wqkv = jnp.concatenate([wdd[qi] * inv, wdd[ki], wdd[vi]], axis=1)  # (D, 3D)
        wpair = wpair.at[i, R_TAB:R_TAB + VOCAB + N, 0:D].set(tab_aug)
        wpair = wpair.at[i, R_QKV:R_QKV + D, 0:3 * D].set(wqkv)
        wpair = wpair.at[i, R_WO:R_WO + D, 0:D].set(wdd[wo_idx[i]])
        wpair = wpair.at[i, R_W1:R_W1 + D, 0:F].set(w1[i])
        wpair = wpair.at[i, R_W2:R_W2 + F, 0:D].set(w2[i])
        wpair = wpair.at[i, R_B1, 0:F].set(b1[i, 0])
        wpair = wpair.at[i, R_B2, 0:D].set(b2[i, 0])
        wpair = wpair.at[i, R_GA, 0:D].set(g[ln_a[i], 0])
        wpair = wpair.at[i, R_BA, 0:D].set(bt[ln_a[i], 0])
        wpair = wpair.at[i, R_GF, 0:D].set(g[ln_f[i], 0])
        wpair = wpair.at[i, R_BF, 0:D].set(bt[ln_f[i], 0])
        wpair = wpair.at[i, R_GO, 0:D].set(g[ln_o[i], 0])
        wpair = wpair.at[i, R_BO, 0:D].set(bt[ln_o[i], 0])
    return wpair


def pack_wcross(params):
    wdd, w1, b1, w2, b2, g, bt = params
    inv = jnp.float32(1.0 / math.sqrt(D))
    wc = jnp.zeros((CROSS_ROWS, CROSS_COLS), jnp.float32)
    wc = wc.at[X_WQ:X_WQ + D, 0:D].set(wdd[8] * inv)
    wc = wc.at[X_WKV:X_WKV + D, 0:2 * D].set(jnp.concatenate([wdd[9], wdd[10]], axis=1))
    wc = wc.at[X_WO:X_WO + D, 0:D].set(wdd[11])
    wc = wc.at[X_G4, 0:D].set(g[4, 0])
    wc = wc.at[X_B4, 0:D].set(bt[4, 0])
    return wc


# ----------------------------- pure-JAX reference ------------------------------
def reference(source, target, src_mask, tgt_mask, params, src_tab, tgt_tab):
    wdd, w1, b1, w2, b2, g, bt = params
    inv = 1.0 / math.sqrt(D)

    src_emb = src_tab[source] * jnp.float32(math.sqrt(D)) + sinusoidal_pe(S_SRC, D)[None]
    tgt_emb = tgt_tab[target] * jnp.float32(math.sqrt(D)) + sinusoidal_pe(S_TGT, D)[None]

    def ln(x, i):
        mu = jnp.mean(x, -1, keepdims=True)
        var = jnp.mean((x - mu) ** 2, -1, keepdims=True)
        return g[i] * (x - mu) / jnp.sqrt(var + EPS) + bt[i]

    def attn(q, k, v, mask):
        s = jnp.einsum("bqd,bkd->bqk", q, k) * inv
        s = jnp.where(mask > 0, s, -1e9)
        p = jax.nn.softmax(s, axis=-1)
        return jnp.einsum("bqk,bkd->bqd", p, v)

    def ffn(h, i):
        return jnp.maximum(h @ w1[i] + b1[i], 0.0) @ w2[i] + b2[i]

    x = src_emb
    h = ln(x, 0)
    x = x + attn(h @ wdd[0], h @ wdd[1], h @ wdd[2], src_mask) @ wdd[3]
    x = x + ffn(ln(x, 1), 0)
    mem = ln(x, 2)

    y = tgt_emb
    h = ln(y, 3)
    y = y + attn(h @ wdd[4], h @ wdd[5], h @ wdd[6], tgt_mask) @ wdd[7]
    h = ln(y, 4)
    y = y + attn(h @ wdd[8], mem @ wdd[9], mem @ wdd[10], src_mask) @ wdd[11]
    y = y + ffn(ln(y, 5), 1)
    return ln(y, 6)


# ----------------------------- main -------------------------------------------
if __name__ == "__main__":
    key = jax.random.PRNGKey(0)
    k_par, k_src, k_tgt = jax.random.split(key, 3)

    params, src_tab, tgt_tab = init_params(k_par)

    source = jax.random.randint(k_src, (B, S_SRC), 0, VOCAB, dtype=jnp.int32)
    target = jax.random.randint(k_tgt, (B, S_TGT), 0, VOCAB, dtype=jnp.int32)

    # module-level masks: source mask all-valid, target mask causal
    source_mask = jnp.ones((B, 1, S_SRC), jnp.float32)
    target_mask = jnp.broadcast_to(
        jnp.tril(jnp.ones((S_TGT, S_TGT), jnp.float32))[None], (B, S_TGT, S_TGT))

    # host-side prep: 3 packed operands total
    data = pack_data(source, target, source_mask, target_mask)
    wpair = pack_wpair(params, src_tab, tgt_tab)
    wcross = pack_wcross(params)

    out = jax.block_until_ready(encoder_decoder_pallas(data, wpair, wcross))

    ref = reference(source, target, source_mask, target_mask, params, src_tab, tgt_tab)
    assert out.shape == (B, S_TGT, D), out.shape
    # Tolerance covers the approximate EUP reciprocal in the softmax normalization.
    max_err = float(jnp.max(jnp.abs(out - ref)))
    assert jnp.allclose(out, ref, atol=1e-2, rtol=1e-2), max_err

    print("KERNEL_OK")
</pallas_src>

<mosaic_0001>
module attributes {stable_mosaic.version = 11 : i64} {
  func.func @encoder_decoder_kernel(%arg0: memref<2x16x64xf32, #tpu.memory_space<vmem>>, %arg1: memref<2x200x96xf32, #tpu.memory_space<vmem>>, %arg2: memref<104x64xf32, #tpu.memory_space<vmem>>, %arg3: memref<16x32xf32, #tpu.memory_space<vmem>>) attributes {dimension_semantics = [], scalar_prefetch = 0 : i64, scratch_operands = 0 : i64, tpu.core_type = #tpu.core_type<tc>} {
    %c0 = arith.constant 0 : index
    %c0_0 = arith.constant 0 : index
    %c0_1 = arith.constant 0 : index
    %0 = vector.load %arg0[%c0, %c0_0, %c0_1] : memref<2x16x64xf32, #tpu.memory_space<vmem>>, vector<2x16x32xf32>
    %c0_2 = arith.constant 0 : index
    %c0_3 = arith.constant 0 : index
    %c32 = arith.constant 32 : index
    %1 = vector.load %arg0[%c0_2, %c0_3, %c32] : memref<2x16x64xf32, #tpu.memory_space<vmem>>, vector<2x16x16xf32>
    %c0_4 = arith.constant 0 : index
    %c0_5 = arith.constant 0 : index
    %c0_6 = arith.constant 0 : index
    %2 = vector.load %arg1[%c0_4, %c0_5, %c0_6] : memref<2x200x96xf32, #tpu.memory_space<vmem>>, vector<2x32x32xf32>
    %cst = arith.constant dense<0.000000e+00> : vector<2x16x32xf32>
    %3 = tpu.matmul %0, %2, %cst {dimension_numbers = #tpu.dot_dimension_numbers<[2], [1], [1], [2], [0, 0, 0, 1, 1, 2], [0], [0]>} : vector<2x16x32xf32>, vector<2x32x32xf32>, vector<2x16x32xf32> -> vector<2x16x32xf32>
    %c0_7 = arith.constant 0 : index
    %c194 = arith.constant 194 : index
    %c0_8 = arith.constant 0 : index
    %4 = vector.load %arg1[%c0_7, %c194, %c0_8] : memref<2x200x96xf32, #tpu.memory_space<vmem>>, vector<2x1x32xf32>
    %c0_9 = arith.constant 0 : index
    %c195 = arith.constant 195 : index
    %c0_10 = arith.constant 0 : index
    %5 = vector.load %arg1[%c0_9, %c195, %c0_10] : memref<2x200x96xf32, #tpu.memory_space<vmem>>, vector<2x1x32xf32>
    %cst_11 = arith.constant dense<0.000000e+00> : vector<2x16xf32>
    %6 = vector.multi_reduction <add>, %3, %cst_11 [2] : vector<2x16x32xf32> to vector<2x16xf32>
    %7 = vector.shape_cast %6 : vector<2x16xf32> to vector<2x16x1xf32>
    %cst_12 = arith.constant 3.200000e+01 : f32
    %8 = vector.broadcast %cst_12 : f32 to vector<2x16x1xf32>
    %9 = arith.divf %7, %8 : vector<2x16x1xf32>
    %10 = vector.broadcast %9 : vector<2x16x1xf32> to vector<2x16x32xf32>
    %11 = arith.subf %3, %10 : vector<2x16x32xf32>
    %12 = arith.mulf %11, %11 : vector<2x16x32xf32>
    %cst_13 = arith.constant dense<0.000000e+00> : vector<2x16xf32>
    %13 = vector.multi_reduction <add>, %12, %cst_13 [2] : vector<2x16x32xf32> to vector<2x16xf32>
    %14 = vector.shape_cast %13 : vector<2x16xf32> to vector<2x16x1xf32>
    %cst_14 = arith.constant 3.200000e+01 : f32
    %15 = vector.broadcast %cst_14 : f32 to vector<2x16x1xf32>
    %16 = arith.divf %14, %15 : vector<2x16x1xf32>
    %17 = vector.broadcast %4 : vector<2x1x32xf32> to vector<2x16x32xf32>
    %18 = arith.mulf %17, %11 : vector<2x16x32xf32>
    %cst_15 = arith.constant 9.99999997E-7 : f32
    %19 = vector.broadcast %cst_15 : f32 to vector<2x16x1xf32>
    %20 = arith.addf %16, %19 : vector<2x16x1xf32>
    %21 = math.rsqrt %20 : vector<2x16x1xf32>
    %22 = vector.broadcast %21 : vector<2x16x1xf32> to vector<2x16x32xf32>
    %23 = arith.mulf %18, %22 : vector<2x16x32xf32>
    %24 = vector.broadcast %5 : vector<2x1x32xf32> to vector<2x16x32xf32>
    %25 = arith.addf %23, %24 : vector<2x16x32xf32>
    %c0_16 = arith.constant 0 : index
    %c32_17 = arith.constant 32 : index
    %c0_18 = arith.constant 0 : index
    %26 = vector.load %arg1[%c0_16, %c32_17, %c0_18] : memref<2x200x96xf32, #tpu.memory_space<vmem>>, vector<2x32x96xf32>
    %cst_19 = arith.constant dense<0.000000e+00> : vector<2x16x96xf32>
    %27 = tpu.matmul %25, %26, %cst_19 {dimension_numbers = #tpu.dot_dimension_numbers<[2], [1], [1], [2], [0, 0, 0, 1, 1, 2], [0], [0]>} : vector<2x16x32xf32>, vector<2x32x96xf32>, vector<2x16x96xf32> -> vector<2x16x96xf32>
    %28 = vector.extract_strided_slice %27 {offsets = [0, 0, 0], sizes = [2, 16, 32], strides = [1, 1, 1]} : vector<2x16x96xf32> to vector<2x16x32xf32>
    %29 = vector.extract_strided_slice %27 {offsets = [0, 0, 32], sizes = [2, 16, 32], strides = [1, 1, 1]} : vector<2x16x96xf32> to vector<2x16x32xf32>
    %30 = vector.extract_strided_slice %27 {offsets = [0, 0, 64], sizes = [2, 16, 32], strides = [1, 1, 1]} : vector<2x16x96xf32> to vector<2x16x32xf32>
    %cst_20 = arith.constant dense<0.000000e+00> : vector<2x16x16xf32>
    %31 = tpu.matmul %28, %29, %cst_20 {dimension_numbers = #tpu.dot_dimension_numbers<[2], [2], [1], [1], [0, 0, 0, 1, 1, 1], [0], [0]>} : vector<2x16x32xf32>, vector<2x16x32xf32>, vector<2x16x16xf32> -> vector<2x16x16xf32>
    %32 = arith.addf %31, %1 : vector<2x16x16xf32>
    %cst_21 = arith.constant dense<0xFF800000> : vector<2x16xf32>
    %33 = vector.multi_reduction <maximumf>, %32, %cst_21 [2] : vector<2x16x16xf32> to vector<2x16xf32>
    %34 = vector.shape_cast %33 : vector<2x16xf32> to vector<2x16x1xf32>
    %35 = vector.broadcast %34 : vector<2x16x1xf32> to vector<2x16x16xf32>
    %36 = arith.subf %32, %35 : vector<2x16x16xf32>
    %37 = math.exp %36 : vector<2x16x16xf32>
    %cst_22 = arith.constant dense<0.000000e+00> : vector<2x16xf32>
    %38 = vector.multi_reduction <add>, %37, %cst_22 [2] : vector<2x16x16xf32> to vector<2x16xf32>
    %39 = vector.shape_cast %38 : vector<2x16xf32> to vector<2x16x1xf32>
    %40 = tpu.reciprocal %39 {approx = true} : vector<2x16x1xf32> -> vector<2x16x1xf32>
    %41 = vector.broadcast %40 : vector<2x16x1xf32> to vector<2x16x16xf32>
    %42 = arith.mulf %37, %41 : vector<2x16x16xf32>
    %cst_23 = arith.constant dense<0.000000e+00> : vector<2x16x32xf32>
    %43 = tpu.matmul %42, %30, %cst_23 {dimension_numbers = #tpu.dot_dimension_numbers<[2], [1], [1], [2], [0, 0, 0, 1, 1, 2], [0], [0]>} : vector<2x16x16xf32>, vector<2x16x32xf32>, vector<2x16x32xf32> -> vector<2x16x32xf32>
    %c0_24 = arith.constant 0 : index
    %c64 = arith.constant 64 : index
    %c0_25 = arith.constant 0 : index
    %44 = vector.load %arg1[%c0_24, %c64, %c0_25] : memref<2x200x96xf32, #tpu.memory_space<vmem>>, vector<2x32x32xf32>
    %cst_26 = arith.constant dense<0.000000e+00> : vector<2x16x32xf32>
    %45 = tpu.matmul %43, %44, %cst_26 {dimension_numbers = #tpu.dot_dimension_numbers<[2], [1], [1], [2], [0, 0, 0, 1, 1, 2], [0], [0]>} : vector<2x16x32xf32>, vector<2x32x32xf32>, vector<2x16x32xf32> -> vector<2x16x32xf32>
    %46 = arith.addf %3, %45 : vector<2x16x32xf32>
    %47 = vector.extract_strided_slice %46 {offsets = [0, 0, 0], sizes = [1, 16, 32], strides = [1, 1, 1]} : vector<2x16x32xf32> to vector<1x16x32xf32>
    %48 = vector.shape_cast %47 : vector<1x16x32xf32> to vector<16x32xf32>
    %c0_27 = arith.constant 0 : index
    %c196 = arith.constant 196 : index
    %c0_28 = arith.constant 0 : index
    %49 = vector.load %arg1[%c0_27, %c196, %c0_28] : memref<2x200x96xf32, #tpu.memory_space<vmem>>, vector<1x1x32xf32>
    %50 = vector.shape_cast %49 : vector<1x1x32xf32> to vector<1x32xf32>
    %c0_29 = arith.constant 0 : index
    %c197 = arith.constant 197 : index
    %c0_30 = arith.constant 0 : index
    %51 = vector.load %arg1[%c0_29, %c197, %c0_30] : memref<2x200x96xf32, #tpu.memory_space<vmem>>, vector<1x1x32xf32>
    %52 = vector.shape_cast %51 : vector<1x1x32xf32> to vector<1x32xf32>
    %cst_31 = arith.constant dense<0.000000e+00> : vector<16xf32>
    %53 = vector.multi_reduction <add>, %48, %cst_31 [1] : vector<16x32xf32> to vector<16xf32>
    %54 = vector.shape_cast %53 : vector<16xf32> to vector<16x1xf32>
    %cst_32 = arith.constant 3.200000e+01 : f32
    %55 = vector.broadcast %cst_32 : f32 to vector<16x1xf32>
    %56 = arith.divf %54, %55 : vector<16x1xf32>
    %57 = vector.broadcast %56 : vector<16x1xf32> to vector<16x32xf32>
    %58 = arith.subf %48, %57 : vector<16x32xf32>
    %59 = arith.mulf %58, %58 : vector<16x32xf32>
    %cst_33 = arith.constant dense<0.000000e+00> : vector<16xf32>
    %60 = vector.multi_reduction <add>, %59, %cst_33 [1] : vector<16x32xf32> to vector<16xf32>
    %61 = vector.shape_cast %60 : vector<16xf32> to vector<16x1xf32>
    %cst_34 = arith.constant 3.200000e+01 : f32
    %62 = vector.broadcast %cst_34 : f32 to vector<16x1xf32>
    %63 = arith.divf %61, %62 : vector<16x1xf32>
    %64 = vector.broadcast %50 : vector<1x32xf32> to vector<16x32xf32>
    %65 = arith.mulf %64, %58 : vector<16x32xf32>
    %cst_35 = arith.constant 9.99999997E-7 : f32
    %66 = vector.broadcast %cst_35 : f32 to vector<16x1xf32>
    %67 = arith.addf %63, %66 : vector<16x1xf32>
    %68 = math.rsqrt %67 : vector<16x1xf32>
    %69 = vector.broadcast %68 : vector<16x1xf32> to vector<16x32xf32>
    %70 = arith.mulf %65, %69 : vector<16x32xf32>
    %71 = vector.broadcast %52 : vector<1x32xf32> to vector<16x32xf32>
    %72 = arith.addf %70, %71 : vector<16x32xf32>
    %c0_36 = arith.constant 0 : index
    %c96 = arith.constant 96 : index
    %c0_37 = arith.constant 0 : index
    %73 = vector.load %arg1[%c0_36, %c96, %c0_37] : memref<2x200x96xf32, #tpu.memory_space<vmem>>, vector<1x32x64xf32>
    %74 = vector.shape_cast %73 : vector<1x32x64xf32> to vector<32x64xf32>
    %c0_38 = arith.constant 0 : index
    %c192 = arith.constant 192 : index
    %c0_39 = arith.constant 0 : index
    %75 = vector.load %arg1[%c0_38, %c192, %c0_39] : memref<2x200x96xf32, #tpu.memory_space<vmem>>, vector<1x1x64xf32>
    %76 = vector.shape_cast %75 : vector<1x1x64xf32> to vector<1x64xf32>
    %c0_40 = arith.constant 0 : index
    %c128 = arith.constant 128 : index
    %c0_41 = arith.constant 0 : index
    %77 = vector.load %arg1[%c0_40, %c128, %c0_41] : memref<2x200x96xf32, #tpu.memory_space<vmem>>, vector<1x64x32xf32>
    %78 = vector.shape_cast %77 : vector<1x64x32xf32> to vector<64x32xf32>
    %c0_42 = arith.constant 0 : index
    %c193 = arith.constant 193 : index
    %c0_43 = arith.constant 0 : index
    %79 = vector.load %arg1[%c0_42, %c193, %c0_43] : memref<2x200x96xf32, #tpu.memory_space<vmem>>, vector<1x1x32xf32>
    %80 = vector.shape_cast %79 : vector<1x1x32xf32> to vector<1x32xf32>
    %cst_44 = arith.constant dense<0.000000e+00> : vector<16x64xf32>
    %81 = tpu.matmul %72, %74, %cst_44 {dimension_numbers = #tpu.dot_dimension_numbers<[1], [0], [0], [1], [0, 0, 1, 1], [], []>} : vector<16x32xf32>, vector<32x64xf32>, vector<16x64xf32> -> vector<16x64xf32>
    %82 = vector.broadcast %76 : vector<1x64xf32> to vector<16x64xf32>
    %83 = arith.addf %81, %82 : vector<16x64xf32>
    %cst_45 = arith.constant 0.000000e+00 : f32
    %84 = vector.broadcast %cst_45 : f32 to vector<16x64xf32>
    %85 = arith.maximumf %83, %84 : vector<16x64xf32>
    %cst_46 = arith.constant dense<0.000000e+00> : vector<16x32xf32>
    %86 = tpu.matmul %85, %78, %cst_46 {dimension_numbers = #tpu.dot_dimension_numbers<[1], [0], [0], [1], [0, 0, 1, 1], [], []>} : vector<16x64xf32>, vector<64x32xf32>, vector<16x32xf32> -> vector<16x32xf32>
    %87 = vector.broadcast %80 : vector<1x32xf32> to vector<16x32xf32>
    %88 = arith.addf %86, %87 : vector<16x32xf32>
    %89 = arith.addf %48, %88 : vector<16x32xf32>
    %c0_47 = arith.constant 0 : index
    %c198 = arith.constant 198 : index
    %c0_48 = arith.constant 0 : index
    %90 = vector.load %arg1[%c0_47, %c198, %c0_48] : memref<2x200x96xf32, #tpu.memory_space<vmem>>, vector<1x1x32xf32>
    %91 = vector.shape_cast %90 : vector<1x1x32xf32> to vector<1x32xf32>
    %c0_49 = arith.constant 0 : index
    %c199 = arith.constant 199 : index
    %c0_50 = arith.constant 0 : index
    %92 = vector.load %arg1[%c0_49, %c199, %c0_50] : memref<2x200x96xf32, #tpu.memory_space<vmem>>, vector<1x1x32xf32>
    %93 = vector.shape_cast %92 : vector<1x1x32xf32> to vector<1x32xf32>
    %cst_51 = arith.constant dense<0.000000e+00> : vector<16xf32>
    %94 = vector.multi_reduction <add>, %89, %cst_51 [1] : vector<16x32xf32> to vector<16xf32>
    %95 = vector.shape_cast %94 : vector<16xf32> to vector<16x1xf32>
    %cst_52 = arith.constant 3.200000e+01 : f32
    %96 = vector.broadcast %cst_52 : f32 to vector<16x1xf32>
    %97 = arith.divf %95, %96 : vector<16x1xf32>
    %98 = vector.broadcast %97 : vector<16x1xf32> to vector<16x32xf32>
    %99 = arith.subf %89, %98 : vector<16x32xf32>
    %100 = arith.mulf %99, %99 : vector<16x32xf32>
    %cst_53 = arith.constant dense<0.000000e+00> : vector<16xf32>
    %101 = vector.multi_reduction <add>, %100, %cst_53 [1] : vector<16x32xf32> to vector<16xf32>
    %102 = vector.shape_cast %101 : vector<16xf32> to vector<16x1xf32>
    %cst_54 = arith.constant 3.200000e+01 : f32
    %103 = vector.broadcast %cst_54 : f32 to vector<16x1xf32>
    %104 = arith.divf %102, %103 : vector<16x1xf32>
    %105 = vector.broadcast %91 : vector<1x32xf32> to vector<16x32xf32>
    %106 = arith.mulf %105, %99 : vector<16x32xf32>
    %cst_55 = arith.constant 9.99999997E-7 : f32
    %107 = vector.broadcast %cst_55 : f32 to vector<16x1xf32>
    %108 = arith.addf %104, %107 : vector<16x1xf32>
    %109 = math.rsqrt %108 : vector<16x1xf32>
    %110 = vector.broadcast %109 : vector<16x1xf32> to vector<16x32xf32>
    %111 = arith.mulf %106, %110 : vector<16x32xf32>
    %112 = vector.broadcast %93 : vector<1x32xf32> to vector<16x32xf32>
    %113 = arith.addf %111, %112 : vector<16x32xf32>
    %114 = vector.extract_strided_slice %46 {offsets = [1, 0, 0], sizes = [1, 16, 32], strides = [1, 1, 1]} : vector<2x16x32xf32> to vector<1x16x32xf32>
    %115 = vector.shape_cast %114 : vector<1x16x32xf32> to vector<16x32xf32>
    %c96_56 = arith.constant 96 : index
    %c0_57 = arith.constant 0 : index
    %116 = vector.load %arg2[%c96_56, %c0_57] : memref<104x64xf32, #tpu.memory_space<vmem>>, vector<1x32xf32>
    %c97 = arith.constant 97 : index
    %c0_58 = arith.constant 0 : index
    %117 = vector.load %arg2[%c97, %c0_58] : memref<104x64xf32, #tpu.memory_space<vmem>>, vector<1x32xf32>
    %cst_59 = arith.constant dense<0.000000e+00> : vector<16xf32>
    %118 = vector.multi_reduction <add>, %115, %cst_59 [1] : vector<16x32xf32> to vector<16xf32>
    %119 = vector.shape_cast %118 : vector<16xf32> to vector<16x1xf32>
    %cst_60 = arith.constant 3.200000e+01 : f32
    %120 = vector.broadcast %cst_60 : f32 to vector<16x1xf32>
    %121 = arith.divf %119, %120 : vector<16x1xf32>
    %122 = vector.broadcast %121 : vector<16x1xf32> to vector<16x32xf32>
    %123 = arith.subf %115, %122 : vector<16x32xf32>
    %124 = arith.mulf %123, %123 : vector<16x32xf32>
    %cst_61 = arith.constant dense<0.000000e+00> : vector<16xf32>
    %125 = vector.multi_reduction <add>, %124, %cst_61 [1] : vector<16x32xf32> to vector<16xf32>
    %126 = vector.shape_cast %125 : vector<16xf32> to vector<16x1xf32>
    %cst_62 = arith.constant 3.200000e+01 : f32
    %127 = vector.broadcast %cst_62 : f32 to vector<16x1xf32>
    %128 = arith.divf %126, %127 : vector<16x1xf32>
    %129 = vector.broadcast %116 : vector<1x32xf32> to vector<16x32xf32>
    %130 = arith.mulf %129, %123 : vector<16x32xf32>
    %cst_63 = arith.constant 9.99999997E-7 : f32
    %131 = vector.broadcast %cst_63 : f32 to vector<16x1xf32>
    %132 = arith.addf %128, %131 : vector<16x1xf32>
    %133 = math.rsqrt %132 : vector<16x1xf32>
    %134 = vector.broadcast %133 : vector<16x1xf32> to vector<16x32xf32>
    %135 = arith.mulf %130, %134 : vector<16x32xf32>
    %136 = vector.broadcast %117 : vector<1x32xf32> to vector<16x32xf32>
    %137 = arith.addf %135, %136 : vector<16x32xf32>
    %c0_64 = arith.constant 0 : index
    %c0_65 = arith.constant 0 : index
    %138 = vector.load %arg2[%c0_64, %c0_65] : memref<104x64xf32, #tpu.memory_space<vmem>>, vector<32x32xf32>
    %cst_66 = arith.constant dense<0.000000e+00> : vector<16x32xf32>
    %139 = tpu.matmul %137, %138, %cst_66 {dimension_numbers = #tpu.dot_dimension_numbers<[1], [0], [0], [1], [0, 0, 1, 1], [], []>} : vector<16x32xf32>, vector<32x32xf32>, vector<16x32xf32> -> vector<16x32xf32>
    %c32_67 = arith.constant 32 : index
    %c0_68 = arith.constant 0 : index
    %140 = vector.load %arg2[%c32_67, %c0_68] : memref<104x64xf32, #tpu.memory_space<vmem>>, vector<32x64xf32>
    %cst_69 = arith.constant dense<0.000000e+00> : vector<16x64xf32>
    %141 = tpu.matmul %113, %140, %cst_69 {dimension_numbers = #tpu.dot_dimension_numbers<[1], [0], [0], [1], [0, 0, 1, 1], [], []>} : vector<16x32xf32>, vector<32x64xf32>, vector<16x64xf32> -> vector<16x64xf32>
    %142 = vector.extract_strided_slice %141 {offsets = [0, 0], sizes = [16, 32], strides = [1, 1]} : vector<16x64xf32> to vector<16x32xf32>
    %cst_70 = arith.constant dense<0.000000e+00> : vector<16x16xf32>
    %143 = tpu.matmul %139, %142, %cst_70 {dimension_numbers = #tpu.dot_dimension_numbers<[1], [1], [0], [0], [0, 0, 1, 0], [], []>} : vector<16x32xf32>, vector<16x32xf32>, vector<16x16xf32> -> vector<16x16xf32>
    %c1 = arith.constant 1 : index
    %c0_71 = arith.constant 0 : index
    %c48 = arith.constant 48 : index
    %144 = vector.load %arg0[%c1, %c0_71, %c48] : memref<2x16x64xf32, #tpu.memory_space<vmem>>, vector<1x16x16xf32>
    %145 = vector.shape_cast %144 : vector<1x16x16xf32> to vector<16x16xf32>
    %146 = arith.addf %143, %145 : vector<16x16xf32>
    %cst_72 = arith.constant dense<0xFF800000> : vector<16xf32>
    %147 = vector.multi_reduction <maximumf>, %146, %cst_72 [1] : vector<16x16xf32> to vector<16xf32>
    %148 = vector.shape_cast %147 : vector<16xf32> to vector<16x1xf32>
    %149 = vector.broadcast %148 : vector<16x1xf32> to vector<16x16xf32>
    %150 = arith.subf %146, %149 : vector<16x16xf32>
    %151 = math.exp %150 : vector<16x16xf32>
    %cst_73 = arith.constant dense<0.000000e+00> : vector<16xf32>
    %152 = vector.multi_reduction <add>, %151, %cst_73 [1] : vector<16x16xf32> to vector<16xf32>
    %153 = vector.shape_cast %152 : vector<16xf32> to vector<16x1xf32>
    %154 = tpu.reciprocal %153 {approx = true} : vector<16x1xf32> -> vector<16x1xf32>
    %155 = vector.broadcast %154 : vector<16x1xf32> to vector<16x16xf32>
    %156 = arith.mulf %151, %155 : vector<16x16xf32>
    %157 = vector.extract_strided_slice %141 {offsets = [0, 32], sizes = [16, 32], strides = [1, 1]} : vector<16x64xf32> to vector<16x32xf32>
    %cst_74 = arith.constant dense<0.000000e+00> : vector<16x32xf32>
    %158 = tpu.matmul %156, %157, %cst_74 {dimension_numbers = #tpu.dot_dimension_numbers<[1], [0], [0], [1], [0, 0, 1, 1], [], []>} : vector<16x16xf32>, vector<16x32xf32>, vector<16x32xf32> -> vector<16x32xf32>
    %c64_75 = arith.constant 64 : index
    %c0_76 = arith.constant 0 : index
    %159 = vector.load %arg2[%c64_75, %c0_76] : memref<104x64xf32, #tpu.memory_space<vmem>>, vector<32x32xf32>
    %cst_77 = arith.constant dense<0.000000e+00> : vector<16x32xf32>
    %160 = tpu.matmul %158, %159, %cst_77 {dimension_numbers = #tpu.dot_dimension_numbers<[1], [0], [0], [1], [0, 0, 1, 1], [], []>} : vector<16x32xf32>, vector<32x32xf32>, vector<16x32xf32> -> vector<16x32xf32>
    %161 = arith.addf %115, %160 : vector<16x32xf32>
    %c1_78 = arith.constant 1 : index
    %c196_79 = arith.constant 196 : index
    %c0_80 = arith.constant 0 : index
    %162 = vector.load %arg1[%c1_78, %c196_79, %c0_80] : memref<2x200x96xf32, #tpu.memory_space<vmem>>, vector<1x1x32xf32>
    %163 = vector.shape_cast %162 : vector<1x1x32xf32> to vector<1x32xf32>
    %c1_81 = arith.constant 1 : index
    %c197_82 = arith.constant 197 : index
    %c0_83 = arith.constant 0 : index
    %164 = vector.load %arg1[%c1_81, %c197_82, %c0_83] : memref<2x200x96xf32, #tpu.memory_space<vmem>>, vector<1x1x32xf32>
    %165 = vector.shape_cast %164 : vector<1x1x32xf32> to vector<1x32xf32>
    %cst_84 = arith.constant dense<0.000000e+00> : vector<16xf32>
    %166 = vector.multi_reduction <add>, %161, %cst_84 [1] : vector<16x32xf32> to vector<16xf32>
    %167 = vector.shape_cast %166 : vector<16xf32> to vector<16x1xf32>
    %cst_85 = arith.constant 3.200000e+01 : f32
    %168 = vector.broadcast %cst_85 : f32 to vector<16x1xf32>
    %169 = arith.divf %167, %168 : vector<16x1xf32>
    %170 = vector.broadcast %169 : vector<16x1xf32> to vector<16x32xf32>
    %171 = arith.subf %161, %170 : vector<16x32xf32>
    %172 = arith.mulf %171, %171 : vector<16x32xf32>
    %cst_86 = arith.constant dense<0.000000e+00> : vector<16xf32>
    %173 = vector.multi_reduction <add>, %172, %cst_86 [1] : vector<16x32xf32> to vector<16xf32>
    %174 = vector.shape_cast %173 : vector<16xf32> to vector<16x1xf32>
    %cst_87 = arith.constant 3.200000e+01 : f32
    %175 = vector.broadcast %cst_87 : f32 to vector<16x1xf32>
    %176 = arith.divf %174, %175 : vector<16x1xf32>
    %177 = vector.broadcast %163 : vector<1x32xf32> to vector<16x32xf32>
    %178 = arith.mulf %177, %171 : vector<16x32xf32>
    %cst_88 = arith.constant 9.99999997E-7 : f32
    %179 = vector.broadcast %cst_88 : f32 to vector<16x1xf32>
    %180 = arith.addf %176, %179 : vector<16x1xf32>
    %181 = math.rsqrt %180 : vector<16x1xf32>
    %182 = vector.broadcast %181 : vector<16x1xf32> to vector<16x32xf32>
    %183 = arith.mulf %178, %182 : vector<16x32xf32>
    %184 = vector.broadcast %165 : vector<1x32xf32> to vector<16x32xf32>
    %185 = arith.addf %183, %184 : vector<16x32xf32>
    %c1_89 = arith.constant 1 : index
    %c96_90 = arith.constant 96 : index
    %c0_91 = arith.constant 0 : index
    %186 = vector.load %arg1[%c1_89, %c96_90, %c0_91] : memref<2x200x96xf32, #tpu.memory_space<vmem>>, vector<1x32x64xf32>
    %187 = vector.shape_cast %186 : vector<1x32x64xf32> to vector<32x64xf32>
    %c1_92 = arith.constant 1 : index
    %c192_93 = arith.constant 192 : index
    %c0_94 = arith.constant 0 : index
    %188 = vector.load %arg1[%c1_92, %c192_93, %c0_94] : memref<2x200x96xf32, #tpu.memory_space<vmem>>, vector<1x1x64xf32>
    %189 = vector.shape_cast %188 : vector<1x1x64xf32> to vector<1x64xf32>
    %c1_95 = arith.constant 1 : index
    %c128_96 = arith.constant 128 : index
    %c0_97 = arith.constant 0 : index
    %190 = vector.load %arg1[%c1_95, %c128_96, %c0_97] : memref<2x200x96xf32, #tpu.memory_space<vmem>>, vector<1x64x32xf32>
    %191 = vector.shape_cast %190 : vector<1x64x32xf32> to vector<64x32xf32>
    %c1_98 = arith.constant 1 : index
    %c193_99 = arith.constant 193 : index
    %c0_100 = arith.constant 0 : index
    %192 = vector.load %arg1[%c1_98, %c193_99, %c0_100] : memref<2x200x96xf32, #tpu.memory_space<vmem>>, vector<1x1x32xf32>
    %193 = vector.shape_cast %192 : vector<1x1x32xf32> to vector<1x32xf32>
    %cst_101 = arith.constant dense<0.000000e+00> : vector<16x64xf32>
    %194 = tpu.matmul %185, %187, %cst_101 {dimension_numbers = #tpu.dot_dimension_numbers<[1], [0], [0], [1], [0, 0, 1, 1], [], []>} : vector<16x32xf32>, vector<32x64xf32>, vector<16x64xf32> -> vector<16x64xf32>
    %195 = vector.broadcast %189 : vector<1x64xf32> to vector<16x64xf32>
    %196 = arith.addf %194, %195 : vector<16x64xf32>
    %cst_102 = arith.constant 0.000000e+00 : f32
    %197 = vector.broadcast %cst_102 : f32 to vector<16x64xf32>
    %198 = arith.maximumf %196, %197 : vector<16x64xf32>
    %cst_103 = arith.constant dense<0.000000e+00> : vector<16x32xf32>
    %199 = tpu.matmul %198, %191, %cst_103 {dimension_numbers = #tpu.dot_dimension_numbers<[1], [0], [0], [1], [0, 0, 1, 1], [], []>} : vector<16x64xf32>, vector<64x32xf32>, vector<16x32xf32> -> vector<16x32xf32>
    %200 = vector.broadcast %193 : vector<1x32xf32> to vector<16x32xf32>
    %201 = arith.addf %199, %200 : vector<16x32xf32>
    %202 = arith.addf %161, %201 : vector<16x32xf32>
    %c1_104 = arith.constant 1 : index
    %c198_105 = arith.constant 198 : index
    %c0_106 = arith.constant 0 : index
    %203 = vector.load %arg1[%c1_104, %c198_105, %c0_106] : memref<2x200x96xf32, #tpu.memory_space<vmem>>, vector<1x1x32xf32>
    %204 = vector.shape_cast %203 : vector<1x1x32xf32> to vector<1x32xf32>
    %c1_107 = arith.constant 1 : index
    %c199_108 = arith.constant 199 : index
    %c0_109 = arith.constant 0 : index
    %205 = vector.load %arg1[%c1_107, %c199_108, %c0_109] : memref<2x200x96xf32, #tpu.memory_space<vmem>>, vector<1x1x32xf32>
    %206 = vector.shape_cast %205 : vector<1x1x32xf32> to vector<1x32xf32>
    %cst_110 = arith.constant dense<0.000000e+00> : vector<16xf32>
    %207 = vector.multi_reduction <add>, %202, %cst_110 [1] : vector<16x32xf32> to vector<16xf32>
    %208 = vector.shape_cast %207 : vector<16xf32> to vector<16x1xf32>
    %cst_111 = arith.constant 3.200000e+01 : f32
    %209 = vector.broadcast %cst_111 : f32 to vector<16x1xf32>
    %210 = arith.divf %208, %209 : vector<16x1xf32>
    %211 = vector.broadcast %210 : vector<16x1xf32> to vector<16x32xf32>
    %212 = arith.subf %202, %211 : vector<16x32xf32>
    %213 = arith.mulf %212, %212 : vector<16x32xf32>
    %cst_112 = arith.constant dense<0.000000e+00> : vector<16xf32>
    %214 = vector.multi_reduction <add>, %213, %cst_112 [1] : vector<16x32xf32> to vector<16xf32>
    %215 = vector.shape_cast %214 : vector<16xf32> to vector<16x1xf32>
    %cst_113 = arith.constant 3.200000e+01 : f32
    %216 = vector.broadcast %cst_113 : f32 to vector<16x1xf32>
    %217 = arith.divf %215, %216 : vector<16x1xf32>
    %218 = vector.broadcast %204 : vector<1x32xf32> to vector<16x32xf32>
    %219 = arith.mulf %218, %212 : vector<16x32xf32>
    %cst_114 = arith.constant 9.99999997E-7 : f32
    %220 = vector.broadcast %cst_114 : f32 to vector<16x1xf32>
    %221 = arith.addf %217, %220 : vector<16x1xf32>
    %222 = math.rsqrt %221 : vector<16x1xf32>
    %223 = vector.broadcast %222 : vector<16x1xf32> to vector<16x32xf32>
    %224 = arith.mulf %219, %223 : vector<16x32xf32>
    %225 = vector.broadcast %206 : vector<1x32xf32> to vector<16x32xf32>
    %226 = arith.addf %224, %225 : vector<16x32xf32>
    %c0_115 = arith.constant 0 : index
    %c0_116 = arith.constant 0 : index
    %227 = vector.load %arg3[%c0_115, %c0_116] : memref<16x32xf32, #tpu.memory_space<vmem>>, vector<16x32xf32>
    tpu.vector_store %arg3[%c0_115, %c0_116], %226 {strides = array<i32>} : memref<16x32xf32, #tpu.memory_space<vmem>>, vector<16x32xf32>,
    return
  }
}

</mosaic_0001>

<llo_original>
// kernel: tpu_custom_call.1
$region0: #{tpu_custom_call.1}
  #allocation0 [shape = 'u32[]', space=smem, size = 0x4, offset = 0x4, fixed_abs, tag = 'smem constant byte address 0x4 - core index']
  #allocation1 [shape = 'u32[144,128]{1,0:T(1,128)}', space=vmem, size = 0x12000, scoped, tag = 'internal scratch']
  %s0 = inlined_call_operand.vmem [shape: f32[2,16,64], index: 0, kind: input, shape index: {}]
  %s1 = inlined_call_operand.vmem [shape: f32[2,200,96], index: 1, kind: input, shape index: {}]
  %s2 = inlined_call_operand.vmem [shape: f32[104,64], index: 2, kind: input, shape index: {}]
  %s3 = inlined_call_operand.hbm [shape: f32[16,32], index: 3, kind: output, shape index: {}]
  %s4 = sld [smem:[#allocation0]]
  $region22: #{tpu_custom_call.1} parent=0
    _
  %s6 = ssub.s32 1, %s4
  %s7 = scalar_select 0, %s6, %s4
  $region1: #{tpu_custom_call.1} parent=0
    #allocation2 [shape = 'u8[8192]{0}', space=vmem, size = 0x2000, scoped, tag = 'output window, operand 0, single buffered']
    #allocation3 [shape = 's32[1]{0}', space=sflag, size = 0x4, scoped, tag = 'scoped memory for tpu_custom_call.1']
    %8 = vsyncpa [#allocation3], 0
    // Predicated region
    $region2: #{tpu_custom_call.1} parent=1 // pred_check
      _
    $region3: #{tpu_custom_call.1} parent=1 // pred_check_branch
      %10 = sbr.rel (0) target = $region5
    $region4: #{tpu_custom_call.1} parent=1 // pred_region
      _
    $region5: #{tpu_custom_call.1} parent=1 // pred_fallthru
      _
    // Predicated region
    $region6: #{tpu_custom_call.1} parent=1 // pred_check
      _
    $region7: #{tpu_custom_call.1} parent=1 // pred_check_branch
      %12 = sbr.rel (0) target = $region9
    $region8: #{tpu_custom_call.1} parent=1 // pred_region
      _
    $region9: #{tpu_custom_call.1} parent=1 // pred_fallthru
      _
    // Predicated region
    $region10: #{tpu_custom_call.1} parent=1 // pred_check
      _
    $region11: #{tpu_custom_call.1} parent=1 // pred_check_branch
      %14 = sbr.rel (0) target = $region13
    $region12: #{tpu_custom_call.1} parent=1 // pred_region
      _
    $region13: #{tpu_custom_call.1} parent=1 // pred_fallthru
      _
    %v15 = vld [vmem:[%s0] sm:$0xff]
    %v16 = vld [vmem:[%s0 + $0x8] sm:$0xff]
    %v17 = vld [vmem:[%s0 + $0x10] sm:$0xff]
    %v18 = vld [vmem:[%s0 + $0x18] sm:$0xff]
    %v19 = vld [vmem:[%s1] sm:$0xff]
    %v20 = vld [vmem:[%s1 + $0x8] sm:$0xff]
    %v21 = vld [vmem:[%s1 + $0x10] sm:$0xff]
    %v22 = vld [vmem:[%s1 + $0x18] sm:$0xff]
    %v23 = vld [vmem:[%s1 + $0xc8] sm:$0xff]
    %v24 = vld [vmem:[%s1 + $0xd0] sm:$0xff]
    %v25 = vld [vmem:[%s1 + $0xd8] sm:$0xff]
    %v26 = vld [vmem:[%s1 + $0xe0] sm:$0xff]
    %vm27 = vcmask 261120
    %v29 = vsel %vm27, %v15, 0
    %v32 = vsel %vm27, %v16, 0
    %34 = vmatprep.subr.mxu0 0.0
    %35 = vmatpush1.msra.mxu0 %v19
    %36 = vmatprep.subr.mxu0 0.0
    %37 = vmatpush1.msra.mxu0 %v20
    %38 = vmatprep.subr.mxu0 0.0
    %39 = vmatpush1.msra.mxu0 %v21
    %40 = vmatprep.subr.mxu0 0.0
    %41 = vmatpush1.msra.mxu0 %v22
    %42 = vmatprep.subr.mxu0 0.0
    %43 = vmatpush1.msra.mxu0 0.0
    %44 = vmatprep.subr.mxu0 0.0
    %45 = vmatpush1.msra.mxu0 0.0
    %46 = vmatprep.subr.mxu0 0.0
    %47 = vmatpush1.msra.mxu0 0.0
    %48 = vmatprep.subr.mxu0 0.0
    %49 = vmatpush1.msra.mxu0 0.0
    %50 = vmatprep.subr.mxu0 0.0
    %51 = vmatpush1.msra.mxu0 0.0
    %52 = vmatprep.subr.mxu0 0.0
    %53 = vmatpush1.msra.mxu0 0.0
    %54 = vmatprep.subr.mxu0 0.0
    %55 = vmatpush1.msra.mxu0 0.0
    %56 = vmatprep.subr.mxu0 0.0
    %57 = vmatpush1.msra.mxu0 0.0
    %58 = vmatprep.subr.mxu0 0.0
    %59 = vmatpush1.msra.mxu0 0.0
    %60 = vmatprep.subr.mxu0 0.0
    %61 = vmatpush1.msra.mxu0 0.0
    %62 = vmatprep.subr.mxu0 0.0
    %63 = vmatpush1.msra.mxu0 0.0
    %64 = vmatprep.subr.mxu0 0.0
    %65 = vmatpush1.msra.mxu0 0.0
    %66 = vmatprep.subr.mxu0 0.0
    %67 = vmatpush1.msra.mxu0 0.0
    %68 = vmatprep.subr.mxu0 0.0
    %69 = vmatpush1.msra.mxu0 0.0
    %70 = vmatprep.subr.mxu0 0.0
    %71 = vmatpush1.msra.mxu0 0.0
    %72 = vmatprep.subr.mxu0 0.0
    %73 = vmatpush1.msra.mxu0 0.0
    %74 = vmatprep.subr.mxu0 0.0
    %75 = vmatpush1.msra.mxu0 0.0
    %76 = vmatprep.subr.mxu0 0.0
    %77 = vmatpush1.msra.mxu0 0.0
    %78 = vmatprep.subr.mxu0 0.0
    %79 = vmatpush1.msra.mxu0 0.0
    %80 = vmatprep.subr.mxu0 0.0
    %81 = vmatpush1.msra.mxu0 0.0
    %82 = vmatprep.subr.mxu0 0.0
    %83 = vmatpush1.msra.mxu0 0.0
    %84 = vmatprep.subr.mxu0 0.0
    %85 = vmatpush1.msra.mxu0 0.0
    %86 = vmatprep.subr.mxu0 0.0
    %87 = vmatpush1.msra.mxu0 0.0
    %88 = vmatprep.subr.mxu0 0.0
    %89 = vmatpush1.msra.mxu0 0.0
    %90 = vmatprep.subr.mxu0 0.0
    %91 = vmatpush1.msra.mxu0 0.0
    %92 = vmatprep.subr.mxu0 0.0
    %93 = vmatpush1.msra.mxu0 0.0
    %94 = vmatprep.subr.mxu0 0.0
    %95 = vmatpush1.msra.mxu0 0.0
    %96 = vmatprep.subr.mxu0 0.0
    %97 = vmatpush1.msra.mxu0 0.0
    %98 = vmatprep.mubr.f32.mxu0 0.0
    %99 = vmatmul.mubr.f32.gmra.mrb[0].mxu0 %v29
    %v100 = vpop.f32.mrb[0].mxu0
    %v101 = vadd.f32 0.0, %v100
    %v102 = vpop.f32.mrb[0].mxu0
    %103 = vmatprep.mubr.f32.mxu0 0.0
    %104 = vmatmul.mubr.f32.gmra.mrb[0].mxu0 %v32
    %v105 = vpop.f32.mrb[0].mxu0
    %v106 = vadd.f32 0.0, %v105
    %v107 = vpop.f32.mrb[0].mxu0
    %108 = vdwg.mxu0
    %v110 = vsel %vm27, %v17, 0
    %v113 = vsel %vm27, %v18, 0
    %115 = vmatprep.subr.mxu0 0.0
    %116 = vmatpush1.msra.mxu0 %v23
    %117 = vmatprep.subr.mxu0 0.0
    %118 = vmatpush1.msra.mxu0 %v24
    %119 = vmatprep.subr.mxu0 0.0
    %120 = vmatpush1.msra.mxu0 %v25
    %121 = vmatprep.subr.mxu0 0.0
    %122 = vmatpush1.msra.mxu0 %v26
    %123 = vmatprep.subr.mxu0 0.0
    %124 = vmatpush1.msra.mxu0 0.0
    %125 = vmatprep.subr.mxu0 0.0
    %126 = vmatpush1.msra.mxu0 0.0
    %127 = vmatprep.subr.mxu0 0.0
    %128 = vmatpush1.msra.mxu0 0.0
    %129 = vmatprep.subr.mxu0 0.0
    %130 = vmatpush1.msra.mxu0 0.0
    %131 = vmatprep.subr.mxu0 0.0
    %132 = vmatpush1.msra.mxu0 0.0
    %133 = vmatprep.subr.mxu0 0.0
    %134 = vmatpush1.msra.mxu0 0.0
    %135 = vmatprep.subr.mxu0 0.0
    %136 = vmatpush1.msra.mxu0 0.0
    %137 = vmatprep.subr.mxu0 0.0
    %138 = vmatpush1.msra.mxu0 0.0
    %139 = vmatprep.subr.mxu0 0.0
    %140 = vmatpush1.msra.mxu0 0.0
    %141 = vmatprep.subr.mxu0 0.0
    %142 = vmatpush1.msra.mxu0 0.0
    %143 = vmatprep.subr.mxu0 0.0
    %144 = vmatpush1.msra.mxu0 0.0
    %145 = vmatprep.subr.mxu0 0.0
    %146 = vmatpush1.msra.mxu0 0.0
    %147 = vmatprep.subr.mxu0 0.0
    %148 = vmatpush1.msra.mxu0 0.0
    %149 = vmatprep.subr.mxu0 0.0
    %150 = vmatpush1.msra.mxu0 0.0
    %151 = vmatprep.subr.mxu0 0.0
    %152 = vmatpush1.msra.mxu0 0.0
    %153 = vmatprep.subr.mxu0 0.0
    %154 = vmatpush1.msra.mxu0 0.0
    %155 = vmatprep.subr.mxu0 0.0
    %156 = vmatpush1.msra.mxu0 0.0
    %157 = vmatprep.subr.mxu0 0.0
    %158 = vmatpush1.msra.mxu0 0.0
    %159 = vmatprep.subr.mxu0 0.0
    %160 = vmatpush1.msra.mxu0 0.0
    %161 = vmatprep.subr.mxu0 0.0
    %162 = vmatpush1.msra.mxu0 0.0
    %163 = vmatprep.subr.mxu0 0.0
    %164 = vmatpush1.msra.mxu0 0.0
    %165 = vmatprep.subr.mxu0 0.0
    %166 = vmatpush1.msra.mxu0 0.0
    %167 = vmatprep.subr.mxu0 0.0
    %168 = vmatpush1.msra.mxu0 0.0
    %169 = vmatprep.subr.mxu0 0.0
    %170 = vmatpush1.msra.mxu0 0.0
    %171 = vmatprep.subr.mxu0 0.0
    %172 = vmatpush1.msra.mxu0 0.0
    %173 = vmatprep.subr.mxu0 0.0
    %174 = vmatpush1.msra.mxu0 0.0
    %175 = vmatprep.subr.mxu0 0.0
    %176 = vmatpush1.msra.mxu0 0.0
    %177 = vmatprep.subr.mxu0 0.0
    %178 = vmatpush1.msra.mxu0 0.0
    %179 = vmatprep.mubr.f32.mxu0 0.0
    %180 = vmatmul.mubr.f32.gmra.mrb[0].mxu0 %v110
    %v181 = vpop.f32.mrb[0].mxu0
    %v182 = vadd.f32 0.0, %v181
    %v183 = vpop.f32.mrb[0].mxu0
    %184 = vmatprep.mubr.f32.mxu0 0.0
    %185 = vmatmul.mubr.f32.gmra.mrb[0].mxu0 %v113
    %v186 = vpop.f32.mrb[0].mxu0
    %v187 = vadd.f32 0.0, %v186
    %v188 = vpop.f32.mrb[0].mxu0
    %189 = vdwg.mxu0
    %v190 = vld [vmem:[%s1 + $0xc2] sm:$0x1]
    %v191 = vld [vmem:[%s1 + $0x18a] sm:$0x1]
    %v192 = vld [vmem:[%s1 + $0xc3] sm:$0x1]
    %v193 = vld [vmem:[%s1 + $0x18b] sm:$0x1]
    %v194 = vsel %vm27, %v101, 0.0
    %195 = vadd.xlane.f32.xlu0 %v194
    %v196 = vpop.xlane.xlu0 %195
    %v197 = vsel %vm27, %v106, 0.0
    %198 = vadd.xlane.f32.xlu0 %v197
    %v199 = vpop.xlane.xlu0 %198
    %v200 = vsel %vm27, %v182, 0.0
    %201 = vadd.xlane.f32.xlu0 %v200
    %v202 = vpop.xlane.xlu0 %201
    %v203 = vsel %vm27, %v187, 0.0
    %204 = vadd.xlane.f32.xlu0 %v203
    %v205 = vpop.xlane.xlu0 %204
    %v206 = vrcp.pop 32.0
    %v207 = vmul.f32 %v196, %v206
    %v208 = vmul.f32 %v199, %v206
    %v209 = vmul.f32 %v202, %v206
    %v210 = vmul.f32 %v205, %v206
    %v211 = vsub.f32 %v101, %v207
    %v212 = vsub.f32 %v106, %v208
    %v213 = vsub.f32 %v182, %v209
    %v214 = vsub.f32 %v187, %v210
    %v215 = vmul.f32 %v211, %v211
    %v216 = vmul.f32 %v212, %v212
    %v217 = vmul.f32 %v213, %v213
    %v218 = vmul.f32 %v214, %v214
    %v219 = vsel %vm27, %v215, 0.0
    %220 = vadd.xlane.f32.xlu0 %v219
    %v221 = vpop.xlane.xlu0 %220
    %v222 = vsel %vm27, %v216, 0.0
    %223 = vadd.xlane.f32.xlu0 %v222
    %v224 = vpop.xlane.xlu0 %223
    %v225 = vsel %vm27, %v217, 0.0
    %226 = vadd.xlane.f32.xlu0 %v225
    %v227 = vpop.xlane.xlu0 %226
    %v228 = vsel %vm27, %v218, 0.0
    %229 = vadd.xlane.f32.xlu0 %v228
    %v230 = vpop.xlane.xlu0 %229
    %v231 = vmul.f32 %v221, %v206
    %v232 = vmul.f32 %v224, %v206
    %v233 = vmul.f32 %v227, %v206
    %v234 = vmul.f32 %v230, %v206
    %v235 = vlaneseq
    %v236 = vshrl.u32 %v235, 7
    %v237 = vsub.s32 0, %v236
    %v238 = vrot.slane %v190, %v237
    %v239 = vlaneseq
    %v240 = vshrl.u32 %v239, 7
    %v241 = vsub.s32 0, %v240
    %v242 = vrot.slane %v191, %v241
    %v243 = vmul.f32 %v238, %v211
    %v244 = vmul.f32 %v238, %v212
    %v245 = vmul.f32 %v242, %v213
    %v246 = vmul.f32 %v242, %v214
    %v247 = vadd.f32 %v231, 1e-06
    %v248 = vadd.f32 %v232, 1e-06
    %v249 = vadd.f32 %v233, 1e-06
    %v250 = vadd.f32 %v234, 1e-06
    %v251 = vrsqrt.pop %v247
    %v252 = vrsqrt.pop %v248
    %v253 = vrsqrt.pop %v249
    %v254 = vrsqrt.pop %v250
    %v255 = vmul.f32 %v243, %v251
    %v256 = vmul.f32 %v244, %v252
    %v257 = vmul.f32 %v245, %v253
    %v258 = vmul.f32 %v246, %v254
    %v259 = vlaneseq
    %v260 = vshrl.u32 %v259, 7
    %v261 = vsub.s32 0, %v260
    %v262 = vrot.slane %v192, %v261
    %v263 = vlaneseq
    %v264 = vshrl.u32 %v263, 7
    %v265 = vsub.s32 0, %v264
    %v266 = vrot.slane %v193, %v265
    %v267 = vadd.f32 %v255, %v262
    %v268 = vadd.f32 %v256, %v262
    %v269 = vadd.f32 %v257, %v266
    %v270 = vadd.f32 %v258, %v266
    %v271 = vld [vmem:[%s1 + $0x20] sm:$0xff]
    %v272 = vld [vmem:[%s1 + $0x28] sm:$0xff]
    %v273 = vld [vmem:[%s1 + $0x30] sm:$0xff]
    %v274 = vld [vmem:[%s1 + $0x38] sm:$0xff]
    %v275 = vld [vmem:[%s1 + $0xe8] sm:$0xff]
    %v276 = vld [vmem:[%s1 + $0xf0] sm:$0xff]
    %v277 = vld [vmem:[%s1 + $0xf8] sm:$0xff]
    %v278 = vld [vmem:[%s1 + $0x100] sm:$0xff]
    %v280 = vsel %vm27, %v267, 0
    %v283 = vsel %vm27, %v268, 0
    %285 = vmatprep.subr.mxu0 0.0
    %286 = vmatpush1.msra.mxu0 %v271
    %287 = vmatprep.subr.mxu0 0.0
    %288 = vmatpush1.msra.mxu0 %v272
    %289 = vmatprep.subr.mxu0 0.0
    %290 = vmatpush1.msra.mxu0 %v273
    %291 = vmatprep.subr.mxu0 0.0
    %292 = vmatpush1.msra.mxu0 %v274
    %293 = vmatprep.subr.mxu0 0.0
    %294 = vmatpush1.msra.mxu0 0.0
    %295 = vmatprep.subr.mxu0 0.0
    %296 = vmatpush1.msra.mxu0 0.0
    %297 = vmatprep.subr.mxu0 0.0
    %298 = vmatpush1.msra.mxu0 0.0
    %299 = vmatprep.subr.mxu0 0.0
    %300 = vmatpush1.msra.mxu0 0.0
    %301 = vmatprep.subr.mxu0 0.0
    %302 = vmatpush1.msra.mxu0 0.0
    %303 = vmatprep.subr.mxu0 0.0
    %304 = vmatpush1.msra.mxu0 0.0
    %305 = vmatprep.subr.mxu0 0.0
    %306 = vmatpush1.msra.mxu0 0.0
    %307 = vmatprep.subr.mxu0 0.0
    %308 = vmatpush1.msra.mxu0 0.0
    %309 = vmatprep.subr.mxu0 0.0
    %310 = vmatpush1.msra.mxu0 0.0
    %311 = vmatprep.subr.mxu0 0.0
    %312 = vmatpush1.msra.mxu0 0.0
    %313 = vmatprep.subr.mxu0 0.0
    %314 = vmatpush1.msra.mxu0 0.0
    %315 = vmatprep.subr.mxu0 0.0
    %316 = vmatpush1.msra.mxu0 0.0
    %317 = vmatprep.subr.mxu0 0.0
    %318 = vmatpush1.msra.mxu0 0.0
    %319 = vmatprep.subr.mxu0 0.0
    %320 = vmatpush1.msra.mxu0 0.0
    %321 = vmatprep.subr.mxu0 0.0
    %322 = vmatpush1.msra.mxu0 0.0
    %323 = vmatprep.subr.mxu0 0.0
    %324 = vmatpush1.msra.mxu0 0.0
    %325 = vmatprep.subr.mxu0 0.0
    %326 = vmatpush1.msra.mxu0 0.0
    %327 = vmatprep.subr.mxu0 0.0
    %328 = vmatpush1.msra.mxu0 0.0
    %329 = vmatprep.subr.mxu0 0.0
    %330 = vmatpush1.msra.mxu0 0.0
    %331 = vmatprep.subr.mxu0 0.0
    %332 = vmatpush1.msra.mxu0 0.0
    %333 = vmatprep.subr.mxu0 0.0
    %334 = vmatpush1.msra.mxu0 0.0
    %335 = vmatprep.subr.mxu0 0.0
    %336 = vmatpush1.msra.mxu0 0.0
    %337 = vmatprep.subr.mxu0 0.0
    %338 = vmatpush1.msra.mxu0 0.0
    %339 = vmatprep.subr.mxu0 0.0
    %340 = vmatpush1.msra.mxu0 0.0
    %341 = vmatprep.subr.mxu0 0.0
    %342 = vmatpush1.msra.mxu0 0.0
    %343 = vmatprep.subr.mxu0 0.0
    %344 = vmatpush1.msra.mxu0 0.0
    %345 = vmatprep.subr.mxu0 0.0
    %346 = vmatpush1.msra.mxu0 0.0
    %347 = vmatprep.subr.mxu0 0.0
    %348 = vmatpush1.msra.mxu0 0.0
    %349 = vmatprep.mubr.f32.mxu0 0.0
    %350 = vmatmul.mubr.f32.gmra.mrb[0].mxu0 %v280
    %v351 = vpop.f32.mrb[0].mxu0
    %v352 = vadd.f32 0.0, %v351
    %v353 = vpop.f32.mrb[0].mxu0
    %354 = vmatprep.mubr.f32.mxu0 0.0
    %355 = vmatmul.mubr.f32.gmra.mrb[0].mxu0 %v283
    %v356 = vpop.f32.mrb[0].mxu0
    %v357 = vadd.f32 0.0, %v356
    %v358 = vpop.f32.mrb[0].mxu0
    %359 = vdwg.mxu0
    %v361 = vsel %vm27, %v269, 0
    %v364 = vsel %vm27, %v270, 0
    %366 = vmatprep.subr.mxu0 0.0
    %367 = vmatpush1.msra.mxu0 %v275
    %368 = vmatprep.subr.mxu0 0.0
    %369 = vmatpush1.msra.mxu0 %v276
    %370 = vmatprep.subr.mxu0 0.0
    %371 = vmatpush1.msra.mxu0 %v277
    %372 = vmatprep.subr.mxu0 0.0
    %373 = vmatpush1.msra.mxu0 %v278
    %374 = vmatprep.subr.mxu0 0.0
    %375 = vmatpush1.msra.mxu0 0.0
    %376 = vmatprep.subr.mxu0 0.0
    %377 = vmatpush1.msra.mxu0 0.0
    %378 = vmatprep.subr.mxu0 0.0
    %379 = vmatpush1.msra.mxu0 0.0
    %380 = vmatprep.subr.mxu0 0.0
    %381 = vmatpush1.msra.mxu0 0.0
    %382 = vmatprep.subr.mxu0 0.0
    %383 = vmatpush1.msra.mxu0 0.0
    %384 = vmatprep.subr.mxu0 0.0
    %385 = vmatpush1.msra.mxu0 0.0
    %386 = vmatprep.subr.mxu0 0.0
    %387 = vmatpush1.msra.mxu0 0.0
    %388 = vmatprep.subr.mxu0 0.0
    %389 = vmatpush1.msra.mxu0 0.0
    %390 = vmatprep.subr.mxu0 0.0
    %391 = vmatpush1.msra.mxu0 0.0
    %392 = vmatprep.subr.mxu0 0.0
    %393 = vmatpush1.msra.mxu0 0.0
    %394 = vmatprep.subr.mxu0 0.0
    %395 = vmatpush1.msra.mxu0 0.0
    %396 = vmatprep.subr.mxu0 0.0
    %397 = vmatpush1.msra.mxu0 0.0
    %398 = vmatprep.subr.mxu0 0.0
    %399 = vmatpush1.msra.mxu0 0.0
    %400 = vmatprep.subr.mxu0 0.0
    %401 = vmatpush1.msra.mxu0 0.0
    %402 = vmatprep.subr.mxu0 0.0
    %403 = vmatpush1.msra.mxu0 0.0
    %404 = vmatprep.subr.mxu0 0.0
    %405 = vmatpush1.msra.mxu0 0.0
    %406 = vmatprep.subr.mxu0 0.0
    %407 = vmatpush1.msra.mxu0 0.0
    %408 = vmatprep.subr.mxu0 0.0
    %409 = vmatpush1.msra.mxu0 0.0
    %410 = vmatprep.subr.mxu0 0.0
    %411 = vmatpush1.msra.mxu0 0.0
    %412 = vmatprep.subr.mxu0 0.0
    %413 = vmatpush1.msra.mxu0 0.0
    %414 = vmatprep.subr.mxu0 0.0
    %415 = vmatpush1.msra.mxu0 0.0
    %416 = vmatprep.subr.mxu0 0.0
    %417 = vmatpush1.msra.mxu0 0.0
    %418 = vmatprep.subr.mxu0 0.0
    %419 = vmatpush1.msra.mxu0 0.0
    %420 = vmatprep.subr.mxu0 0.0
    %421 = vmatpush1.msra.mxu0 0.0
    %422 = vmatprep.subr.mxu0 0.0
    %423 = vmatpush1.msra.mxu0 0.0
    %424 = vmatprep.subr.mxu0 0.0
    %425 = vmatpush1.msra.mxu0 0.0
    %426 = vmatprep.subr.mxu0 0.0
    %427 = vmatpush1.msra.mxu0 0.0
    %428 = vmatprep.subr.mxu0 0.0
    %429 = vmatpush1.msra.mxu0 0.0
    %430 = vmatprep.mubr.f32.mxu0 0.0
    %431 = vmatmul.mubr.f32.gmra.mrb[0].mxu0 %v361
    %v432 = vpop.f32.mrb[0].mxu0
    %v433 = vadd.f32 0.0, %v432
    %v434 = vpop.f32.mrb[0].mxu0
    %435 = vmatprep.mubr.f32.mxu0 0.0
    %436 = vmatmul.mubr.f32.gmra.mrb[0].mxu0 %v364
    %v437 = vpop.f32.mrb[0].mxu0
    %v438 = vadd.f32 0.0, %v437
    %v439 = vpop.f32.mrb[0].mxu0
    %440 = vdwg.mxu0
    %443 = vrot.lane.b32.xlu0 %v352, 96
    %v444 = vpop.permute.xlu0 %443
    %445 = vrot.lane.b32.xlu0 %v357, 96
    %v446 = vpop.permute.xlu0 %445
    %447 = vrot.lane.b32.xlu0 %v15, 96
    %v448 = vpop.permute.xlu0 %447
    %449 = vrot.lane.b32.xlu0 %v16, 96
    %v450 = vpop.permute.xlu0 %449
    %v453 = vsel %vm27, %v352, 0
    %v455 = vsel %vm27, %v357, 0
    %v457 = vsel %vm27, %v444, 0
    %v459 = vsel %vm27, %v446, 0
    %461 = vmatprep.subr.mxu0 0.0
    %462 = vmatpush1.xpose.msra.mxu0 %v457
    %463 = vmatprep.subr.mxu0 0.0
    %464 = vmatpush1.xpose.msra.mxu0 %v459
    %465 = vmatprep.subr.mxu0 0.0
    %466 = vmatpush1.xpose.msra.mxu0 0.0
    %467 = vmatprep.subr.mxu0 0.0
    %468 = vmatpush1.xpose.msra.mxu0 0.0
    %469 = vmatprep.subr.mxu0 0.0
    %470 = vmatpush1.xpose.msra.mxu0 0.0
    %471 = vmatprep.subr.mxu0 0.0
    %472 = vmatpush1.xpose.msra.mxu0 0.0
    %473 = vmatprep.subr.mxu0 0.0
    %474 = vmatpush1.xpose.msra.mxu0 0.0
    %475 = vmatprep.subr.mxu0 0.0
    %476 = vmatpush1.xpose.msra.mxu0 0.0
    %477 = vmatprep.subr.mxu0 0.0
    %478 = vmatpush1.xpose.msra.mxu0 0.0
    %479 = vmatprep.subr.mxu0 0.0
    %480 = vmatpush1.xpose.msra.mxu0 0.0
    %481 = vmatprep.subr.mxu0 0.0
    %482 = vmatpush1.xpose.msra.mxu0 0.0
    %483 = vmatprep.subr.mxu0 0.0
    %484 = vmatpush1.xpose.msra.mxu0 0.0
    %485 = vmatprep.subr.mxu0 0.0
    %486 = vmatpush1.xpose.msra.mxu0 0.0
    %487 = vmatprep.subr.mxu0 0.0
    %488 = vmatpush1.xpose.msra.mxu0 0.0
    %489 = vmatprep.subr.mxu0 0.0
    %490 = vmatpush1.xpose.msra.mxu0 0.0
    %491 = vmatprep.subr.mxu0 0.0
    %492 = vmatpush1.xpose.msra.mxu0 0.0
    %493 = vmatprep.subr.mxu0 0.0
    %494 = vmatpush1.xpose.msra.mxu0 0.0
    %495 = vmatprep.subr.mxu0 0.0
    %496 = vmatpush1.xpose.msra.mxu0 0.0
    %497 = vmatprep.subr.mxu0 0.0
    %498 = vmatpush1.xpose.msra.mxu0 0.0
    %499 = vmatprep.subr.mxu0 0.0
    %500 = vmatpush1.xpose.msra.mxu0 0.0
    %501 = vmatprep.subr.mxu0 0.0
    %502 = vmatpush1.xpose.msra.mxu0 0.0
    %503 = vmatprep.subr.mxu0 0.0
    %504 = vmatpush1.xpose.msra.mxu0 0.0
    %505 = vmatprep.subr.mxu0 0.0
    %506 = vmatpush1.xpose.msra.mxu0 0.0
    %507 = vmatprep.subr.mxu0 0.0
    %508 = vmatpush1.xpose.msra.mxu0 0.0
    %509 = vmatprep.subr.mxu0 0.0
    %510 = vmatpush1.xpose.msra.mxu0 0.0
    %511 = vmatprep.subr.mxu0 0.0
    %512 = vmatpush1.xpose.msra.mxu0 0.0
    %513 = vmatprep.subr.mxu0 0.0
    %514 = vmatpush1.xpose.msra.mxu0 0.0
    %515 = vmatprep.subr.mxu0 0.0
    %516 = vmatpush1.xpose.msra.mxu0 0.0
    %517 = vmatprep.subr.mxu0 0.0
    %518 = vmatpush1.xpose.msra.mxu0 0.0
    %519 = vmatprep.subr.mxu0 0.0
    %520 = vmatpush1.xpose.msra.mxu0 0.0
    %521 = vmatprep.subr.mxu0 0.0
    %522 = vmatpush1.xpose.msra.mxu0 0.0
    %523 = vmatprep.subr.mxu0 0.0
    %524 = vmatpush1.xpose.msra.mxu0 0.0
    %525 = vmatprep.mubr.f32.mxu0 0.0
    %526 = vmatmul.mubr.f32.gmra.mrb[0].mxu0 %v453
    %v527 = vpop.f32.mrb[0].mxu0
    %v528 = vadd.f32 %v448, %v527
    %v529 = vpop.f32.mrb[0].mxu0
    %530 = vmatprep.mubr.f32.mxu0 0.0
    %531 = vmatmul.mubr.f32.gmra.mrb[0].mxu0 %v455
    %v532 = vpop.f32.mrb[0].mxu0
    %v533 = vadd.f32 %v450, %v532
    %v534 = vpop.f32.mrb[0].mxu0
    %535 = vdwg.mxu0
    %538 = vrot.lane.b32.xlu0 %v433, 96
    %v539 = vpop.permute.xlu0 %538
    %540 = vrot.lane.b32.xlu0 %v438, 96
    %v541 = vpop.permute.xlu0 %540
    %542 = vrot.lane.b32.xlu0 %v17, 96
    %v543 = vpop.permute.xlu0 %542
    %544 = vrot.lane.b32.xlu0 %v18, 96
    %v545 = vpop.permute.xlu0 %544
    %v548 = vsel %vm27, %v433, 0
    %v550 = vsel %vm27, %v438, 0
    %v552 = vsel %vm27, %v539, 0
    %v554 = vsel %vm27, %v541, 0
    %556 = vmatprep.subr.mxu0 0.0
    %557 = vmatpush1.xpose.msra.mxu0 %v552
    %558 = vmatprep.subr.mxu0 0.0
    %559 = vmatpush1.xpose.msra.mxu0 %v554
    %560 = vmatprep.subr.mxu0 0.0
    %561 = vmatpush1.xpose.msra.mxu0 0.0
    %562 = vmatprep.subr.mxu0 0.0
    %563 = vmatpush1.xpose.msra.mxu0 0.0
    %564 = vmatprep.subr.mxu0 0.0
    %565 = vmatpush1.xpose.msra.mxu0 0.0
    %566 = vmatprep.subr.mxu0 0.0
    %567 = vmatpush1.xpose.msra.mxu0 0.0
    %568 = vmatprep.subr.mxu0 0.0
    %569 = vmatpush1.xpose.msra.mxu0 0.0
    %570 = vmatprep.subr.mxu0 0.0
    %571 = vmatpush1.xpose.msra.mxu0 0.0
    %572 = vmatprep.subr.mxu0 0.0
    %573 = vmatpush1.xpose.msra.mxu0 0.0
    %574 = vmatprep.subr.mxu0 0.0
    %575 = vmatpush1.xpose.msra.mxu0 0.0
    %576 = vmatprep.subr.mxu0 0.0
    %577 = vmatpush1.xpose.msra.mxu0 0.0
    %578 = vmatprep.subr.mxu0 0.0
    %579 = vmatpush1.xpose.msra.mxu0 0.0
    %580 = vmatprep.subr.mxu0 0.0
    %581 = vmatpush1.xpose.msra.mxu0 0.0
    %582 = vmatprep.subr.mxu0 0.0
    %583 = vmatpush1.xpose.msra.mxu0 0.0
    %584 = vmatprep.subr.mxu0 0.0
    %585 = vmatpush1.xpose.msra.mxu0 0.0
    %586 = vmatprep.subr.mxu0 0.0
    %587 = vmatpush1.xpose.msra.mxu0 0.0
    %588 = vmatprep.subr.mxu0 0.0
    %589 = vmatpush1.xpose.msra.mxu0 0.0
    %590 = vmatprep.subr.mxu0 0.0
    %591 = vmatpush1.xpose.msra.mxu0 0.0
    %592 = vmatprep.subr.mxu0 0.0
    %593 = vmatpush1.xpose.msra.mxu0 0.0
    %594 = vmatprep.subr.mxu0 0.0
    %595 = vmatpush1.xpose.msra.mxu0 0.0
    %596 = vmatprep.subr.mxu0 0.0
    %597 = vmatpush1.xpose.msra.mxu0 0.0
    %598 = vmatprep.subr.mxu0 0.0
    %599 = vmatpush1.xpose.msra.mxu0 0.0
    %600 = vmatprep.subr.mxu0 0.0
    %601 = vmatpush1.xpose.msra.mxu0 0.0
    %602 = vmatprep.subr.mxu0 0.0
    %603 = vmatpush1.xpose.msra.mxu0 0.0
    %604 = vmatprep.subr.mxu0 0.0
    %605 = vmatpush1.xpose.msra.mxu0 0.0
    %606 = vmatprep.subr.mxu0 0.0
    %607 = vmatpush1.xpose.msra.mxu0 0.0
    %608 = vmatprep.subr.mxu0 0.0
    %609 = vmatpush1.xpose.msra.mxu0 0.0
    %610 = vmatprep.subr.mxu0 0.0
    %611 = vmatpush1.xpose.msra.mxu0 0.0
    %612 = vmatprep.subr.mxu0 0.0
    %613 = vmatpush1.xpose.msra.mxu0 0.0
    %614 = vmatprep.subr.mxu0 0.0
    %615 = vmatpush1.xpose.msra.mxu0 0.0
    %616 = vmatprep.subr.mxu0 0.0
    %617 = vmatpush1.xpose.msra.mxu0 0.0
    %618 = vmatprep.subr.mxu0 0.0
    %619 = vmatpush1.xpose.msra.mxu0 0.0
    %620 = vmatprep.mubr.f32.mxu0 0.0
    %621 = vmatmul.mubr.f32.gmra.mrb[0].mxu0 %v548
    %v622 = vpop.f32.mrb[0].mxu0
    %v623 = vadd.f32 %v543, %v622
    %v624 = vpop.f32.mrb[0].mxu0
    %625 = vmatprep.mubr.f32.mxu0 0.0
    %626 = vmatmul.mubr.f32.gmra.mrb[0].mxu0 %v550
    %v627 = vpop.f32.mrb[0].mxu0
    %v628 = vadd.f32 %v545, %v627
    %v629 = vpop.f32.mrb[0].mxu0
    %630 = vdwg.mxu0
    %vm631 = vcmask 130048
    %v632 = vsel %vm631, %v528, -inf
    %633 = vmax.xlane.f32.xlu0 %v632
    %v634 = vpop.xlane.xlu0 %633
    %v635 = vsel %vm631, %v533, -inf
    %636 = vmax.xlane.f32.xlu0 %v635
    %v637 = vpop.xlane.xlu0 %636
    %v638 = vsel %vm631, %v623, -inf
    %639 = vmax.xlane.f32.xlu0 %v638
    %v640 = vpop.xlane.xlu0 %639
    %v641 = vsel %vm631, %v628, -inf
    %642 = vmax.xlane.f32.xlu0 %v641
    %v643 = vpop.xlane.xlu0 %642
    %v644 = vsub.f32 %v528, %v634
    %v645 = vsub.f32 %v533, %v637
    %v646 = vsub.f32 %v623, %v640
    %v647 = vsub.f32 %v628, %v643
    %v648 = vmul.f32 %v644, 1.442695
    %v649 = vpow.pop %v648
    %v650 = vmul.f32 %v645, 1.442695
    %v651 = vpow.pop %v650
    %v652 = vmul.f32 %v646, 1.442695
    %v653 = vpow.pop %v652
    %v654 = vmul.f32 %v647, 1.442695
    %v655 = vpow.pop %v654
    %v656 = vsel %vm631, %v649, 0.0
    %657 = vadd.xlane.f32.xlu0 %v656
    %v658 = vpop.xlane.xlu0 %657
    %v659 = vsel %vm631, %v651, 0.0
    %660 = vadd.xlane.f32.xlu0 %v659
    %v661 = vpop.xlane.xlu0 %660
    %v662 = vsel %vm631, %v653, 0.0
    %663 = vadd.xlane.f32.xlu0 %v662
    %v664 = vpop.xlane.xlu0 %663
    %v665 = vsel %vm631, %v655, 0.0
    %666 = vadd.xlane.f32.xlu0 %v665
    %v667 = vpop.xlane.xlu0 %666
    %v668 = vrcp.pop %v658
    %v669 = vrcp.pop %v661
    %v670 = vrcp.pop %v664
    %v671 = vrcp.pop %v667
    %v672 = vmul.f32 %v649, %v668
    %v673 = vmul.f32 %v651, %v669
    %v674 = vmul.f32 %v653, %v670
    %v675 = vmul.f32 %v655, %v671
    %676 = vrot.lane.b32.xlu0 %v352, 64
    %v677 = vpop.permute.xlu0 %676
    %678 = vrot.lane.b32.xlu0 %v357, 64
    %v679 = vpop.permute.xlu0 %678
    %v683 = vsel %vm631, %v672, 0
    %v686 = vsel %vm631, %v673, 0
    %688 = vmatprep.subr.mxu0 0.0
    %689 = vmatpush1.msra.mxu0 %v677
    %690 = vmatprep.subr.mxu0 0.0
    %691 = vmatpush1.msra.mxu0 %v679
    %692 = vmatprep.subr.mxu0 0.0
    %693 = vmatpush1.msra.mxu0 0.0
    %694 = vmatprep.subr.mxu0 0.0
    %695 = vmatpush1.msra.mxu0 0.0
    %696 = vmatprep.subr.mxu0 0.0
    %697 = vmatpush1.msra.mxu0 0.0
    %698 = vmatprep.subr.mxu0 0.0
    %699 = vmatpush1.msra.mxu0 0.0
    %700 = vmatprep.subr.mxu0 0.0
    %701 = vmatpush1.msra.mxu0 0.0
    %702 = vmatprep.subr.mxu0 0.0
    %703 = vmatpush1.msra.mxu0 0.0
    %704 = vmatprep.subr.mxu0 0.0
    %705 = vmatpush1.msra.mxu0 0.0
    %706 = vmatprep.subr.mxu0 0.0
    %707 = vmatpush1.msra.mxu0 0.0
    %708 = vmatprep.subr.mxu0 0.0
    %709 = vmatpush1.msra.mxu0 0.0
    %710 = vmatprep.subr.mxu0 0.0
    %711 = vmatpush1.msra.mxu0 0.0
    %712 = vmatprep.subr.mxu0 0.0
    %713 = vmatpush1.msra.mxu0 0.0
    %714 = vmatprep.subr.mxu0 0.0
    %715 = vmatpush1.msra.mxu0 0.0
    %716 = vmatprep.subr.mxu0 0.0
    %717 = vmatpush1.msra.mxu0 0.0
    %718 = vmatprep.subr.mxu0 0.0
    %719 = vmatpush1.msra.mxu0 0.0
    %720 = vmatprep.subr.mxu0 0.0
    %721 = vmatpush1.msra.mxu0 0.0
    %722 = vmatprep.subr.mxu0 0.0
    %723 = vmatpush1.msra.mxu0 0.0
    %724 = vmatprep.subr.mxu0 0.0
    %725 = vmatpush1.msra.mxu0 0.0
    %726 = vmatprep.subr.mxu0 0.0
    %727 = vmatpush1.msra.mxu0 0.0
    %728 = vmatprep.subr.mxu0 0.0
    %729 = vmatpush1.msra.mxu0 0.0
    %730 = vmatprep.subr.mxu0 0.0
    %731 = vmatpush1.msra.mxu0 0.0
    %732 = vmatprep.subr.mxu0 0.0
    %733 = vmatpush1.msra.mxu0 0.0
    %734 = vmatprep.subr.mxu0 0.0
    %735 = vmatpush1.msra.mxu0 0.0
    %736 = vmatprep.subr.mxu0 0.0
    %737 = vmatpush1.msra.mxu0 0.0
    %738 = vmatprep.subr.mxu0 0.0
    %739 = vmatpush1.msra.mxu0 0.0
    %740 = vmatprep.subr.mxu0 0.0
    %741 = vmatpush1.msra.mxu0 0.0
    %742 = vmatprep.subr.mxu0 0.0
    %743 = vmatpush1.msra.mxu0 0.0
    %744 = vmatprep.subr.mxu0 0.0
    %745 = vmatpush1.msra.mxu0 0.0
    %746 = vmatprep.subr.mxu0 0.0
    %747 = vmatpush1.msra.mxu0 0.0
    %748 = vmatprep.subr.mxu0 0.0
    %749 = vmatpush1.msra.mxu0 0.0
    %750 = vmatprep.subr.mxu0 0.0
    %751 = vmatpush1.msra.mxu0 0.0
    %752 = vmatprep.mubr.f32.mxu0 0.0
    %753 = vmatmul.mubr.f32.gmra.mrb[0].mxu0 %v683
    %v754 = vpop.f32.mrb[0].mxu0
    %v755 = vadd.f32 0.0, %v754
    %v756 = vpop.f32.mrb[0].mxu0
    %757 = vmatprep.mubr.f32.mxu0 0.0
    %758 = vmatmul.mubr.f32.gmra.mrb[0].mxu0 %v686
    %v759 = vpop.f32.mrb[0].mxu0
    %v760 = vadd.f32 0.0, %v759
    %v761 = vpop.f32.mrb[0].mxu0
    %762 = vdwg.mxu0
    %763 = vrot.lane.b32.xlu0 %v433, 64
    %v764 = vpop.permute.xlu0 %763
    %765 = vrot.lane.b32.xlu0 %v438, 64
    %v766 = vpop.permute.xlu0 %765
    %v770 = vsel %vm631, %v674, 0
    %v773 = vsel %vm631, %v675, 0
    %775 = vmatprep.subr.mxu0 0.0
    %776 = vmatpush1.msra.mxu0 %v764
    %777 = vmatprep.subr.mxu0 0.0
    %778 = vmatpush1.msra.mxu0 %v766
    %779 = vmatprep.subr.mxu0 0.0
    %780 = vmatpush1.msra.mxu0 0.0
    %781 = vmatprep.subr.mxu0 0.0
    %782 = vmatpush1.msra.mxu0 0.0
    %783 = vmatprep.subr.mxu0 0.0
    %784 = vmatpush1.msra.mxu0 0.0
    %785 = vmatprep.subr.mxu0 0.0
    %786 = vmatpush1.msra.mxu0 0.0
    %787 = vmatprep.subr.mxu0 0.0
    %788 = vmatpush1.msra.mxu0 0.0
    %789 = vmatprep.subr.mxu0 0.0
    %790 = vmatpush1.msra.mxu0 0.0
    %791 = vmatprep.subr.mxu0 0.0
    %792 = vmatpush1.msra.mxu0 0.0
    %793 = vmatprep.subr.mxu0 0.0
    %794 = vmatpush1.msra.mxu0 0.0
    %795 = vmatprep.subr.mxu0 0.0
    %796 = vmatpush1.msra.mxu0 0.0
    %797 = vmatprep.subr.mxu0 0.0
    %798 = vmatpush1.msra.mxu0 0.0
    %799 = vmatprep.subr.mxu0 0.0
    %800 = vmatpush1.msra.mxu0 0.0
    %801 = vmatprep.subr.mxu0 0.0
    %802 = vmatpush1.msra.mxu0 0.0
    %803 = vmatprep.subr.mxu0 0.0
    %804 = vmatpush1.msra.mxu0 0.0
    %805 = vmatprep.subr.mxu0 0.0
    %806 = vmatpush1.msra.mxu0 0.0
    %807 = vmatprep.subr.mxu0 0.0
    %808 = vmatpush1.msra.mxu0 0.0
    %809 = vmatprep.subr.mxu0 0.0
    %810 = vmatpush1.msra.mxu0 0.0
    %811 = vmatprep.subr.mxu0 0.0
    %812 = vmatpush1.msra.mxu0 0.0
    %813 = vmatprep.subr.mxu0 0.0
    %814 = vmatpush1.msra.mxu0 0.0
    %815 = vmatprep.subr.mxu0 0.0
    %816 = vmatpush1.msra.mxu0 0.0
    %817 = vmatprep.subr.mxu0 0.0
    %818 = vmatpush1.msra.mxu0 0.0
    %819 = vmatprep.subr.mxu0 0.0
    %820 = vmatpush1.msra.mxu0 0.0
    %821 = vmatprep.subr.mxu0 0.0
    %822 = vmatpush1.msra.mxu0 0.0
    %823 = vmatprep.subr.mxu0 0.0
    %824 = vmatpush1.msra.mxu0 0.0
    %825 = vmatprep.subr.mxu0 0.0
    %826 = vmatpush1.msra.mxu0 0.0
    %827 = vmatprep.subr.mxu0 0.0
    %828 = vmatpush1.msra.mxu0 0.0
    %829 = vmatprep.subr.mxu0 0.0
    %830 = vmatpush1.msra.mxu0 0.0
    %831 = vmatprep.subr.mxu0 0.0
    %832 = vmatpush1.msra.mxu0 0.0
    %833 = vmatprep.subr.mxu0 0.0
    %834 = vmatpush1.msra.mxu0 0.0
    %835 = vmatprep.subr.mxu0 0.0
    %836 = vmatpush1.msra.mxu0 0.0
    %837 = vmatprep.subr.mxu0 0.0
    %838 = vmatpush1.msra.mxu0 0.0
    %839 = vmatprep.mubr.f32.mxu0 0.0
    %840 = vmatmul.mubr.f32.gmra.mrb[0].mxu0 %v770
    %v841 = vpop.f32.mrb[0].mxu0
    %v842 = vadd.f32 0.0, %v841
    %v843 = vpop.f32.mrb[0].mxu0
    %844 = vmatprep.mubr.f32.mxu0 0.0
    %845 = vmatmul.mubr.f32.gmra.mrb[0].mxu0 %v773
    %v846 = vpop.f32.mrb[0].mxu0
    %v847 = vadd.f32 0.0, %v846
    %v848 = vpop.f32.mrb[0].mxu0
    %849 = vdwg.mxu0
    %v850 = vld [vmem:[%s1 + $0x40] sm:$0xff]
    %v851 = vld [vmem:[%s1 + $0x48] sm:$0xff]
    %v852 = vld [vmem:[%s1 + $0x50] sm:$0xff]
    %v853 = vld [vmem:[%s1 + $0x58] sm:$0xff]
    %v854 = vld [vmem:[%s1 + $0x108] sm:$0xff]
    %v855 = vld [vmem:[%s1 + $0x110] sm:$0xff]
    %v856 = vld [vmem:[%s1 + $0x118] sm:$0xff]
    %v857 = vld [vmem:[%s1 + $0x120] sm:$0xff]
    %v859 = vsel %vm27, %v755, 0
    %v862 = vsel %vm27, %v760, 0
    %864 = vmatprep.subr.mxu0 0.0
    %865 = vmatpush1.msra.mxu0 %v850
    %866 = vmatprep.subr.mxu0 0.0
    %867 = vmatpush1.msra.mxu0 %v851
    %868 = vmatprep.subr.mxu0 0.0
    %869 = vmatpush1.msra.mxu0 %v852
    %870 = vmatprep.subr.mxu0 0.0
    %871 = vmatpush1.msra.mxu0 %v853
    %872 = vmatprep.subr.mxu0 0.0
    %873 = vmatpush1.msra.mxu0 0.0
    %874 = vmatprep.subr.mxu0 0.0
    %875 = vmatpush1.msra.mxu0 0.0
    %876 = vmatprep.subr.mxu0 0.0
    %877 = vmatpush1.msra.mxu0 0.0
    %878 = vmatprep.subr.mxu0 0.0
    %879 = vmatpush1.msra.mxu0 0.0
    %880 = vmatprep.subr.mxu0 0.0
    %881 = vmatpush1.msra.mxu0 0.0
    %882 = vmatprep.subr.mxu0 0.0
    %883 = vmatpush1.msra.mxu0 0.0
    %884 = vmatprep.subr.mxu0 0.0
    %885 = vmatpush1.msra.mxu0 0.0
    %886 = vmatprep.subr.mxu0 0.0
    %887 = vmatpush1.msra.mxu0 0.0
    %888 = vmatprep.subr.mxu0 0.0
    %889 = vmatpush1.msra.mxu0 0.0
    %890 = vmatprep.subr.mxu0 0.0
    %891 = vmatpush1.msra.mxu0 0.0
    %892 = vmatprep.subr.mxu0 0.0
    %893 = vmatpush1.msra.mxu0 0.0
    %894 = vmatprep.subr.mxu0 0.0
    %895 = vmatpush1.msra.mxu0 0.0
    %896 = vmatprep.subr.mxu0 0.0
    %897 = vmatpush1.msra.mxu0 0.0
    %898 = vmatprep.subr.mxu0 0.0
    %899 = vmatpush1.msra.mxu0 0.0
    %900 = vmatprep.subr.mxu0 0.0
    %901 = vmatpush1.msra.mxu0 0.0
    %902 = vmatprep.subr.mxu0 0.0
    %903 = vmatpush1.msra.mxu0 0.0
    %904 = vmatprep.subr.mxu0 0.0
    %905 = vmatpush1.msra.mxu0 0.0
    %906 = vmatprep.subr.mxu0 0.0
    %907 = vmatpush1.msra.mxu0 0.0
    %908 = vmatprep.subr.mxu0 0.0
    %909 = vmatpush1.msra.mxu0 0.0
    %910 = vmatprep.subr.mxu0 0.0
    %911 = vmatpush1.msra.mxu0 0.0
    %912 = vmatprep.subr.mxu0 0.0
    %913 = vmatpush1.msra.mxu0 0.0
    %914 = vmatprep.subr.mxu0 0.0
    %915 = vmatpush1.msra.mxu0 0.0
    %916 = vmatprep.subr.mxu0 0.0
    %917 = vmatpush1.msra.mxu0 0.0
    %918 = vmatprep.subr.mxu0 0.0
    %919 = vmatpush1.msra.mxu0 0.0
    %920 = vmatprep.subr.mxu0 0.0
    %921 = vmatpush1.msra.mxu0 0.0
    %922 = vmatprep.subr.mxu0 0.0
    %923 = vmatpush1.msra.mxu0 0.0
    %924 = vmatprep.subr.mxu0 0.0
    %925 = vmatpush1.msra.mxu0 0.0
    %926 = vmatprep.subr.mxu0 0.0
    %927 = vmatpush1.msra.mxu0 0.0
    %928 = vmatprep.mubr.f32.mxu0 0.0
    %929 = vmatmul.mubr.f32.gmra.mrb[0].mxu0 %v859
    %v930 = vpop.f32.mrb[0].mxu0
    %v931 = vadd.f32 0.0, %v930
    %v932 = vpop.f32.mrb[0].mxu0
    %933 = vmatprep.mubr.f32.mxu0 0.0
    %934 = vmatmul.mubr.f32.gmra.mrb[0].mxu0 %v862
    %v935 = vpop.f32.mrb[0].mxu0
    %v936 = vadd.f32 0.0, %v935
    %v937 = vpop.f32.mrb[0].mxu0
    %938 = vdwg.mxu0
    %v940 = vsel %vm27, %v842, 0
    %v943 = vsel %vm27, %v847, 0
    %945 = vmatprep.subr.mxu0 0.0
    %946 = vmatpush1.msra.mxu0 %v854
    %947 = vmatprep.subr.mxu0 0.0
    %948 = vmatpush1.msra.mxu0 %v855
    %949 = vmatprep.subr.mxu0 0.0
    %950 = vmatpush1.msra.mxu0 %v856
    %951 = vmatprep.subr.mxu0 0.0
    %952 = vmatpush1.msra.mxu0 %v857
    %953 = vmatprep.subr.mxu0 0.0
    %954 = vmatpush1.msra.mxu0 0.0
    %955 = vmatprep.subr.mxu0 0.0
    %956 = vmatpush1.msra.mxu0 0.0
    %957 = vmatprep.subr.mxu0 0.0
    %958 = vmatpush1.msra.mxu0 0.0
    %959 = vmatprep.subr.mxu0 0.0
    %960 = vmatpush1.msra.mxu0 0.0
    %961 = vmatprep.subr.mxu0 0.0
    %962 = vmatpush1.msra.mxu0 0.0
    %963 = vmatprep.subr.mxu0 0.0
    %964 = vmatpush1.msra.mxu0 0.0
    %965 = vmatprep.subr.mxu0 0.0
    %966 = vmatpush1.msra.mxu0 0.0
    %967 = vmatprep.subr.mxu0 0.0
    %968 = vmatpush1.msra.mxu0 0.0
    %969 = vmatprep.subr.mxu0 0.0
    %970 = vmatpush1.msra.mxu0 0.0
    %971 = vmatprep.subr.mxu0 0.0
    %972 = vmatpush1.msra.mxu0 0.0
    %973 = vmatprep.subr.mxu0 0.0
    %974 = vmatpush1.msra.mxu0 0.0
    %975 = vmatprep.subr.mxu0 0.0
    %976 = vmatpush1.msra.mxu0 0.0
    %977 = vmatprep.subr.mxu0 0.0
    %978 = vmatpush1.msra.mxu0 0.0
    %979 = vmatprep.subr.mxu0 0.0
    %980 = vmatpush1.msra.mxu0 0.0
    %981 = vmatprep.subr.mxu0 0.0
    %982 = vmatpush1.msra.mxu0 0.0
    %983 = vmatprep.subr.mxu0 0.0
    %984 = vmatpush1.msra.mxu0 0.0
    %985 = vmatprep.subr.mxu0 0.0
    %986 = vmatpush1.msra.mxu0 0.0
    %987 = vmatprep.subr.mxu0 0.0
    %988 = vmatpush1.msra.mxu0 0.0
    %989 = vmatprep.subr.mxu0 0.0
    %990 = vmatpush1.msra.mxu0 0.0
    %991 = vmatprep.subr.mxu0 0.0
    %992 = vmatpush1.msra.mxu0 0.0
    %993 = vmatprep.subr.mxu0 0.0
    %994 = vmatpush1.msra.mxu0 0.0
    %995 = vmatprep.subr.mxu0 0.0
    %996 = vmatpush1.msra.mxu0 0.0
    %997 = vmatprep.subr.mxu0 0.0
    %998 = vmatpush1.msra.mxu0 0.0
    %999 = vmatprep.subr.mxu0 0.0
    %1000 = vmatpush1.msra.mxu0 0.0
    %1001 = vmatprep.subr.mxu0 0.0
    %1002 = vmatpush1.msra.mxu0 0.0
    %1003 = vmatprep.subr.mxu0 0.0
    %1004 = vmatpush1.msra.mxu0 0.0
    %1005 = vmatprep.subr.mxu0 0.0
    %1006 = vmatpush1.msra.mxu0 0.0
    %1007 = vmatprep.subr.mxu0 0.0
    %1008 = vmatpush1.msra.mxu0 0.0
    %1009 = vmatprep.mubr.f32.mxu0 0.0
    %1010 = vmatmul.mubr.f32.gmra.mrb[0].mxu0 %v940
    %v1011 = vpop.f32.mrb[0].mxu0
    %v1012 = vadd.f32 0.0, %v1011
    %v1013 = vpop.f32.mrb[0].mxu0
    %1014 = vmatprep.mubr.f32.mxu0 0.0
    %1015 = vmatmul.mubr.f32.gmra.mrb[0].mxu0 %v943
    %v1016 = vpop.f32.mrb[0].mxu0
    %v1017 = vadd.f32 0.0, %v1016
    %v1018 = vpop.f32.mrb[0].mxu0
    %1019 = vdwg.mxu0
    %v1020 = vadd.f32 %v101, %v931
    %v1021 = vadd.f32 %v106, %v936
    %v1022 = vadd.f32 %v182, %v1012
    %v1023 = vadd.f32 %v187, %v1017
    %v1024 = vld [vmem:[%s1 + $0xc4] sm:$0x1]
    %v1025 = vld [vmem:[%s1 + $0xc5] sm:$0x1]
    %v1026 = vsel %vm27, %v1020, 0.0
    %1027 = vadd.xlane.f32.xlu0 %v1026
    %v1028 = vpop.xlane.xlu0 %1027
    %v1029 = vsel %vm27, %v1021, 0.0
    %1030 = vadd.xlane.f32.xlu0 %v1029
    %v1031 = vpop.xlane.xlu0 %1030
    %v1032 = vmul.f32 %v1028, %v206
    %v1033 = vmul.f32 %v1031, %v206
    %v1034 = vsub.f32 %v1020, %v1032
    %v1035 = vsub.f32 %v1021, %v1033
    %v1036 = vmul.f32 %v1034, %v1034
    %v1037 = vmul.f32 %v1035, %v1035
    %v1038 = vsel %vm27, %v1036, 0.0
    %1039 = vadd.xlane.f32.xlu0 %v1038
    %v1040 = vpop.xlane.xlu0 %1039
    %v1041 = vsel %vm27, %v1037, 0.0
    %1042 = vadd.xlane.f32.xlu0 %v1041
    %v1043 = vpop.xlane.xlu0 %1042
    %v1044 = vmul.f32 %v1040, %v206
    %v1045 = vmul.f32 %v1043, %v206
    %v1046 = vlaneseq
    %v1047 = vshrl.u32 %v1046, 7
    %v1048 = vsub.s32 0, %v1047
    %v1049 = vrot.slane %v1024, %v1048
    %v1050 = vmul.f32 %v1049, %v1034
    %v1051 = vmul.f32 %v1049, %v1035
    %v1052 = vadd.f32 %v1044, 1e-06
    %v1053 = vadd.f32 %v1045, 1e-06
    %v1054 = vrsqrt.pop %v1052
    %v1055 = vrsqrt.pop %v1053
    %v1056 = vmul.f32 %v1050, %v1054
    %v1057 = vmul.f32 %v1051, %v1055
    %v1058 = vlaneseq
    %v1059 = vshrl.u32 %v1058, 7
    %v1060 = vsub.s32 0, %v1059
    %v1061 = vrot.slane %v1025, %v1060
    %v1062 = vadd.f32 %v1056, %v1061
    %v1063 = vadd.f32 %v1057, %v1061
    %v1064 = vld [vmem:[%s1 + $0x60] sm:$0xff]
    %v1065 = vld [vmem:[%s1 + $0x68] sm:$0xff]
    %v1066 = vld [vmem:[%s1 + $0x70] sm:$0xff]
    %v1067 = vld [vmem:[%s1 + $0x78] sm:$0xff]
    %v1068 = vld [vmem:[%s1 + $0xc0] sm:$0x1]
    %v1069 = vld [vmem:[%s1 + $0x80] sm:$0xff]
    %v1070 = vld [vmem:[%s1 + $0x88] sm:$0xff]
    %v1071 = vld [vmem:[%s1 + $0x90] sm:$0xff]
    %v1072 = vld [vmem:[%s1 + $0x98] sm:$0xff]
    %v1073 = vld [vmem:[%s1 + $0xa0] sm:$0xff]
    %v1074 = vld [vmem:[%s1 + $0xa8] sm:$0xff]
    %v1075 = vld [vmem:[%s1 + $0xb0] sm:$0xff]
    %v1076 = vld [vmem:[%s1 + $0xb8] sm:$0xff]
    %v1077 = vld [vmem:[%s1 + $0xc1] sm:$0x1]
    %v1078 = vlaneseq
    %v1079 = vshrl.u32 %v1078, 7
    %v1080 = vsub.s32 0, %v1079
    %v1081 = vrot.slane %v1068, %v1080
    %v1083 = vsel %vm27, %v1062, 0
    %v1086 = vsel %vm27, %v1063, 0
    %1088 = vmatprep.subr.mxu0 0.0
    %1089 = vmatpush1.msra.mxu0 %v1064
    %1090 = vmatprep.subr.mxu0 0.0
    %1091 = vmatpush1.msra.mxu0 %v1065
    %1092 = vmatprep.subr.mxu0 0.0
    %1093 = vmatpush1.msra.mxu0 %v1066
    %1094 = vmatprep.subr.mxu0 0.0
    %1095 = vmatpush1.msra.mxu0 %v1067
    %1096 = vmatprep.subr.mxu0 0.0
    %1097 = vmatpush1.msra.mxu0 0.0
    %1098 = vmatprep.subr.mxu0 0.0
    %1099 = vmatpush1.msra.mxu0 0.0
    %1100 = vmatprep.subr.mxu0 0.0
    %1101 = vmatpush1.msra.mxu0 0.0
    %1102 = vmatprep.subr.mxu0 0.0
    %1103 = vmatpush1.msra.mxu0 0.0
    %1104 = vmatprep.subr.mxu0 0.0
    %1105 = vmatpush1.msra.mxu0 0.0
    %1106 = vmatprep.subr.mxu0 0.0
    %1107 = vmatpush1.msra.mxu0 0.0
    %1108 = vmatprep.subr.mxu0 0.0
    %1109 = vmatpush1.msra.mxu0 0.0
    %1110 = vmatprep.subr.mxu0 0.0
    %1111 = vmatpush1.msra.mxu0 0.0
    %1112 = vmatprep.subr.mxu0 0.0
    %1113 = vmatpush1.msra.mxu0 0.0
    %1114 = vmatprep.subr.mxu0 0.0
    %1115 = vmatpush1.msra.mxu0 0.0
    %1116 = vmatprep.subr.mxu0 0.0
    %1117 = vmatpush1.msra.mxu0 0.0
    %1118 = vmatprep.subr.mxu0 0.0
    %1119 = vmatpush1.msra.mxu0 0.0
    %1120 = vmatprep.subr.mxu0 0.0
    %1121 = vmatpush1.msra.mxu0 0.0
    %1122 = vmatprep.subr.mxu0 0.0
    %1123 = vmatpush1.msra.mxu0 0.0
    %1124 = vmatprep.subr.mxu0 0.0
    %1125 = vmatpush1.msra.mxu0 0.0
    %1126 = vmatprep.subr.mxu0 0.0
    %1127 = vmatpush1.msra.mxu0 0.0
    %1128 = vmatprep.subr.mxu0 0.0
    %1129 = vmatpush1.msra.mxu0 0.0
    %1130 = vmatprep.subr.mxu0 0.0
    %1131 = vmatpush1.msra.mxu0 0.0
    %1132 = vmatprep.subr.mxu0 0.0
    %1133 = vmatpush1.msra.mxu0 0.0
    %1134 = vmatprep.subr.mxu0 0.0
    %1135 = vmatpush1.msra.mxu0 0.0
    %1136 = vmatprep.subr.mxu0 0.0
    %1137 = vmatpush1.msra.mxu0 0.0
    %1138 = vmatprep.subr.mxu0 0.0
    %1139 = vmatpush1.msra.mxu0 0.0
    %1140 = vmatprep.subr.mxu0 0.0
    %1141 = vmatpush1.msra.mxu0 0.0
    %1142 = vmatprep.subr.mxu0 0.0
    %1143 = vmatpush1.msra.mxu0 0.0
    %1144 = vmatprep.subr.mxu0 0.0
    %1145 = vmatpush1.msra.mxu0 0.0
    %1146 = vmatprep.subr.mxu0 0.0
    %1147 = vmatpush1.msra.mxu0 0.0
    %1148 = vmatprep.subr.mxu0 0.0
    %1149 = vmatpush1.msra.mxu0 0.0
    %1150 = vmatprep.subr.mxu0 0.0
    %1151 = vmatpush1.msra.mxu0 0.0
    %1152 = vmatprep.mubr.f32.mxu0 0.0
    %1153 = vmatmul.mubr.f32.gmra.mrb[0].mxu0 %v1083
    %v1154 = vpop.f32.mrb[0].mxu0
    %v1155 = vadd.f32 %v1081, %v1154
    %v1156 = vpop.f32.mrb[0].mxu0
    %1157 = vmatprep.mubr.f32.mxu0 0.0
    %1158 = vmatmul.mubr.f32.gmra.mrb[0].mxu0 %v1086
    %v1159 = vpop.f32.mrb[0].mxu0
    %v1160 = vadd.f32 %v1081, %v1159
    %v1161 = vpop.f32.mrb[0].mxu0
    %1162 = vdwg.mxu0
    %v1163 = vmax.f32 %v1155, 0.0
    %v1164 = vmax.f32 %v1160, 0.0
    %v1165 = vlaneseq
    %v1166 = vshrl.u32 %v1165, 7
    %v1167 = vsub.s32 0, %v1166
    %v1168 = vrot.slane %v1077, %v1167
    %vm1169 = vcmask 523264
    %v1171 = vsel %vm1169, %v1163, 0
    %v1174 = vsel %vm1169, %v1164, 0
    %1176 = vmatprep.subr.mxu0 0.0
    %1177 = vmatpush1.msra.mxu0 %v1069
    %1178 = vmatprep.subr.mxu0 0.0
    %1179 = vmatpush1.msra.mxu0 %v1070
    %1180 = vmatprep.subr.mxu0 0.0
    %1181 = vmatpush1.msra.mxu0 %v1071
    %1182 = vmatprep.subr.mxu0 0.0
    %1183 = vmatpush1.msra.mxu0 %v1072
    %1184 = vmatprep.subr.mxu0 0.0
    %1185 = vmatpush1.msra.mxu0 %v1073
    %1186 = vmatprep.subr.mxu0 0.0
    %1187 = vmatpush1.msra.mxu0 %v1074
    %1188 = vmatprep.subr.mxu0 0.0
    %1189 = vmatpush1.msra.mxu0 %v1075
    %1190 = vmatprep.subr.mxu0 0.0
    %1191 = vmatpush1.msra.mxu0 %v1076
    %1192 = vmatprep.subr.mxu0 0.0
    %1193 = vmatpush1.msra.mxu0 0.0
    %1194 = vmatprep.subr.mxu0 0.0
    %1195 = vmatpush1.msra.mxu0 0.0
    %1196 = vmatprep.subr.mxu0 0.0
    %1197 = vmatpush1.msra.mxu0 0.0
    %1198 = vmatprep.subr.mxu0 0.0
    %1199 = vmatpush1.msra.mxu0 0.0
    %1200 = vmatprep.subr.mxu0 0.0
    %1201 = vmatpush1.msra.mxu0 0.0
    %1202 = vmatprep.subr.mxu0 0.0
    %1203 = vmatpush1.msra.mxu0 0.0
    %1204 = vmatprep.subr.mxu0 0.0
    %1205 = vmatpush1.msra.mxu0 0.0
    %1206 = vmatprep.subr.mxu0 0.0
    %1207 = vmatpush1.msra.mxu0 0.0
    %1208 = vmatprep.subr.mxu0 0.0
    %1209 = vmatpush1.msra.mxu0 0.0
    %1210 = vmatprep.subr.mxu0 0.0
    %1211 = vmatpush1.msra.mxu0 0.0
    %1212 = vmatprep.subr.mxu0 0.0
    %1213 = vmatpush1.msra.mxu0 0.0
    %1214 = vmatprep.subr.mxu0 0.0
    %1215 = vmatpush1.msra.mxu0 0.0
    %1216 = vmatprep.subr.mxu0 0.0
    %1217 = vmatpush1.msra.mxu0 0.0
    %1218 = vmatprep.subr.mxu0 0.0
    %1219 = vmatpush1.msra.mxu0 0.0
    %1220 = vmatprep.subr.mxu0 0.0
    %1221 = vmatpush1.msra.mxu0 0.0
    %1222 = vmatprep.subr.mxu0 0.0
    %1223 = vmatpush1.msra.mxu0 0.0
    %1224 = vmatprep.subr.mxu0 0.0
    %1225 = vmatpush1.msra.mxu0 0.0
    %1226 = vmatprep.subr.mxu0 0.0
    %1227 = vmatpush1.msra.mxu0 0.0
    %1228 = vmatprep.subr.mxu0 0.0
    %1229 = vmatpush1.msra.mxu0 0.0
    %1230 = vmatprep.subr.mxu0 0.0
    %1231 = vmatpush1.msra.mxu0 0.0
    %1232 = vmatprep.subr.mxu0 0.0
    %1233 = vmatpush1.msra.mxu0 0.0
    %1234 = vmatprep.subr.mxu0 0.0
    %1235 = vmatpush1.msra.mxu0 0.0
    %1236 = vmatprep.subr.mxu0 0.0
    %1237 = vmatpush1.msra.mxu0 0.0
    %1238 = vmatprep.subr.mxu0 0.0
    %1239 = vmatpush1.msra.mxu0 0.0
    %1240 = vmatprep.mubr.f32.mxu0 0.0
    %1241 = vmatmul.mubr.f32.gmra.mrb[0].mxu0 %v1171
    %v1242 = vpop.f32.mrb[0].mxu0
    %v1243 = vadd.f32 %v1168, %v1242
    %v1244 = vpop.f32.mrb[0].mxu0
    %1245 = vmatprep.mubr.f32.mxu0 0.0
    %1246 = vmatmul.mubr.f32.gmra.mrb[0].mxu0 %v1174
    %v1247 = vpop.f32.mrb[0].mxu0
    %v1248 = vadd.f32 %v1168, %v1247
    %v1249 = vpop.f32.mrb[0].mxu0
    %1250 = vdwg.mxu0
    %v1251 = vadd.f32 %v1020, %v1243
    %v1252 = vadd.f32 %v1021, %v1248
    %v1253 = vld [vmem:[%s1 + $0xc6] sm:$0x1]
    %v1254 = vld [vmem:[%s1 + $0xc7] sm:$0x1]
    %v1255 = vsel %vm27, %v1251, 0.0
    %1256 = vadd.xlane.f32.xlu0 %v1255
    %v1257 = vpop.xlane.xlu0 %1256
    %v1258 = vsel %vm27, %v1252, 0.0
    %1259 = vadd.xlane.f32.xlu0 %v1258
    %v1260 = vpop.xlane.xlu0 %1259
    %v1261 = vmul.f32 %v1257, %v206
    %v1262 = vmul.f32 %v1260, %v206
    %v1263 = vsub.f32 %v1251, %v1261
    %v1264 = vsub.f32 %v1252, %v1262
    %v1265 = vmul.f32 %v1263, %v1263
    %v1266 = vmul.f32 %v1264, %v1264
    %v1267 = vsel %vm27, %v1265, 0.0
    %1268 = vadd.xlane.f32.xlu0 %v1267
    %v1269 = vpop.xlane.xlu0 %1268
    %v1270 = vsel %vm27, %v1266, 0.0
    %1271 = vadd.xlane.f32.xlu0 %v1270
    %v1272 = vpop.xlane.xlu0 %1271
    %v1273 = vmul.f32 %v1269, %v206
    %v1274 = vmul.f32 %v1272, %v206
    %v1275 = vlaneseq
    %v1276 = vshrl.u32 %v1275, 7
    %v1277 = vsub.s32 0, %v1276
    %v1278 = vrot.slane %v1253, %v1277
    %v1279 = vmul.f32 %v1278, %v1263
    %v1280 = vmul.f32 %v1278, %v1264
    %v1281 = vadd.f32 %v1273, 1e-06
    %v1282 = vadd.f32 %v1274, 1e-06
    %v1283 = vrsqrt.pop %v1281
    %v1284 = vrsqrt.pop %v1282
    %v1285 = vmul.f32 %v1279, %v1283
    %v1286 = vmul.f32 %v1280, %v1284
    %v1287 = vlaneseq
    %v1288 = vshrl.u32 %v1287, 7
    %v1289 = vsub.s32 0, %v1288
    %v1290 = vrot.slane %v1254, %v1289
    %v1291 = vadd.f32 %v1285, %v1290
    %v1292 = vadd.f32 %v1286, %v1290
    %v1293 = vld [vmem:[%s2 + $0x60] sm:$0x1]
    %v1294 = vld [vmem:[%s2 + $0x61] sm:$0x1]
    %v1295 = vsel %vm27, %v1022, 0.0
    %1296 = vadd.xlane.f32.xlu0 %v1295
    %v1297 = vpop.xlane.xlu0 %1296
    %v1298 = vsel %vm27, %v1023, 0.0
    %1299 = vadd.xlane.f32.xlu0 %v1298
    %v1300 = vpop.xlane.xlu0 %1299
    %v1301 = vmul.f32 %v1297, %v206
    %v1302 = vmul.f32 %v1300, %v206
    %v1303 = vsub.f32 %v1022, %v1301
    %v1304 = vsub.f32 %v1023, %v1302
    %v1305 = vmul.f32 %v1303, %v1303
    %v1306 = vmul.f32 %v1304, %v1304
    %v1307 = vsel %vm27, %v1305, 0.0
    %1308 = vadd.xlane.f32.xlu0 %v1307
    %v1309 = vpop.xlane.xlu0 %1308
    %v1310 = vsel %vm27, %v1306, 0.0
    %1311 = vadd.xlane.f32.xlu0 %v1310
    %v1312 = vpop.xlane.xlu0 %1311
    %v1313 = vmul.f32 %v1309, %v206
    %v1314 = vmul.f32 %v1312, %v206
    %v1315 = vlaneseq
    %v1316 = vshrl.u32 %v1315, 7
    %v1317 = vsub.s32 0, %v1316
    %v1318 = vrot.slane %v1293, %v1317
    %v1319 = vmul.f32 %v1318, %v1303
    %v1320 = vmul.f32 %v1318, %v1304
    %v1321 = vadd.f32 %v1313, 1e-06
    %v1322 = vadd.f32 %v1314, 1e-06
    %v1323 = vrsqrt.pop %v1321
    %v1324 = vrsqrt.pop %v1322
    %v1325 = vmul.f32 %v1319, %v1323
    %v1326 = vmul.f32 %v1320, %v1324
    %v1327 = vlaneseq
    %v1328 = vshrl.u32 %v1327, 7
    %v1329 = vsub.s32 0, %v1328
    %v1330 = vrot.slane %v1294, %v1329
    %v1331 = vadd.f32 %v1325, %v1330
    %v1332 = vadd.f32 %v1326, %v1330
    %v1333 = vld [vmem:[%s2] sm:$0xff]
    %v1334 = vld [vmem:[%s2 + $0x8] sm:$0xff]
    %v1335 = vld [vmem:[%s2 + $0x10] sm:$0xff]
    %v1336 = vld [vmem:[%s2 + $0x18] sm:$0xff]
    %v1338 = vsel %vm27, %v1331, 0
    %v1341 = vsel %vm27, %v1332, 0
    %1343 = vmatprep.subr.mxu0 0.0
    %1344 = vmatpush1.msra.mxu0 %v1333
    %1345 = vmatprep.subr.mxu0 0.0
    %1346 = vmatpush1.msra.mxu0 %v1334
    %1347 = vmatprep.subr.mxu0 0.0
    %1348 = vmatpush1.msra.mxu0 %v1335
    %1349 = vmatprep.subr.mxu0 0.0
    %1350 = vmatpush1.msra.mxu0 %v1336
    %1351 = vmatprep.subr.mxu0 0.0
    %1352 = vmatpush1.msra.mxu0 0.0
    %1353 = vmatprep.subr.mxu0 0.0
    %1354 = vmatpush1.msra.mxu0 0.0
    %1355 = vmatprep.subr.mxu0 0.0
    %1356 = vmatpush1.msra.mxu0 0.0
    %1357 = vmatprep.subr.mxu0 0.0
    %1358 = vmatpush1.msra.mxu0 0.0
    %1359 = vmatprep.subr.mxu0 0.0
    %1360 = vmatpush1.msra.mxu0 0.0
    %1361 = vmatprep.subr.mxu0 0.0
    %1362 = vmatpush1.msra.mxu0 0.0
    %1363 = vmatprep.subr.mxu0 0.0
    %1364 = vmatpush1.msra.mxu0 0.0
    %1365 = vmatprep.subr.mxu0 0.0
    %1366 = vmatpush1.msra.mxu0 0.0
    %1367 = vmatprep.subr.mxu0 0.0
    %1368 = vmatpush1.msra.mxu0 0.0
    %1369 = vmatprep.subr.mxu0 0.0
    %1370 = vmatpush1.msra.mxu0 0.0
    %1371 = vmatprep.subr.mxu0 0.0
    %1372 = vmatpush1.msra.mxu0 0.0
    %1373 = vmatprep.subr.mxu0 0.0
    %1374 = vmatpush1.msra.mxu0 0.0
    %1375 = vmatprep.subr.mxu0 0.0
    %1376 = vmatpush1.msra.mxu0 0.0
    %1377 = vmatprep.subr.mxu0 0.0
    %1378 = vmatpush1.msra.mxu0 0.0
    %1379 = vmatprep.subr.mxu0 0.0
    %1380 = vmatpush1.msra.mxu0 0.0
    %1381 = vmatprep.subr.mxu0 0.0
    %1382 = vmatpush1.msra.mxu0 0.0
    %1383 = vmatprep.subr.mxu0 0.0
    %1384 = vmatpush1.msra.mxu0 0.0
    %1385 = vmatprep.subr.mxu0 0.0
    %1386 = vmatpush1.msra.mxu0 0.0
    %1387 = vmatprep.subr.mxu0 0.0
    %1388 = vmatpush1.msra.mxu0 0.0
    %1389 = vmatprep.subr.mxu0 0.0
    %1390 = vmatpush1.msra.mxu0 0.0
    %1391 = vmatprep.subr.mxu0 0.0
    %1392 = vmatpush1.msra.mxu0 0.0
    %1393 = vmatprep.subr.mxu0 0.0
    %1394 = vmatpush1.msra.mxu0 0.0
    %1395 = vmatprep.subr.mxu0 0.0
    %1396 = vmatpush1.msra.mxu0 0.0
    %1397 = vmatprep.subr.mxu0 0.0
    %1398 = vmatpush1.msra.mxu0 0.0
    %1399 = vmatprep.subr.mxu0 0.0
    %1400 = vmatpush1.msra.mxu0 0.0
    %1401 = vmatprep.subr.mxu0 0.0
    %1402 = vmatpush1.msra.mxu0 0.0
    %1403 = vmatprep.subr.mxu0 0.0
    %1404 = vmatpush1.msra.mxu0 0.0
    %1405 = vmatprep.subr.mxu0 0.0
    %1406 = vmatpush1.msra.mxu0 0.0
    %1407 = vmatprep.mubr.f32.mxu0 0.0
    %1408 = vmatmul.mubr.f32.gmra.mrb[0].mxu0 %v1338
    %v1409 = vpop.f32.mrb[0].mxu0
    %v1410 = vadd.f32 0.0, %v1409
    %v1411 = vpop.f32.mrb[0].mxu0
    %1412 = vmatprep.mubr.f32.mxu0 0.0
    %1413 = vmatmul.mubr.f32.gmra.mrb[0].mxu0 %v1341
    %v1414 = vpop.f32.mrb[0].mxu0
    %v1415 = vadd.f32 0.0, %v1414
    %v1416 = vpop.f32.mrb[0].mxu0
    %1417 = vdwg.mxu0
    %v1418 = vld [vmem:[%s2 + $0x20] sm:$0xff]
    %v1419 = vld [vmem:[%s2 + $0x28] sm:$0xff]
    %v1420 = vld [vmem:[%s2 + $0x30] sm:$0xff]
    %v1421 = vld [vmem:[%s2 + $0x38] sm:$0xff]
    %v1423 = vsel %vm27, %v1291, 0
    %v1426 = vsel %vm27, %v1292, 0
    %1428 = vmatprep.subr.mxu0 0.0
    %1429 = vmatpush1.msra.mxu0 %v1418
    %1430 = vmatprep.subr.mxu0 0.0
    %1431 = vmatpush1.msra.mxu0 %v1419
    %1432 = vmatprep.subr.mxu0 0.0
    %1433 = vmatpush1.msra.mxu0 %v1420
    %1434 = vmatprep.subr.mxu0 0.0
    %1435 = vmatpush1.msra.mxu0 %v1421
    %1436 = vmatprep.subr.mxu0 0.0
    %1437 = vmatpush1.msra.mxu0 0.0
    %1438 = vmatprep.subr.mxu0 0.0
    %1439 = vmatpush1.msra.mxu0 0.0
    %1440 = vmatprep.subr.mxu0 0.0
    %1441 = vmatpush1.msra.mxu0 0.0
    %1442 = vmatprep.subr.mxu0 0.0
    %1443 = vmatpush1.msra.mxu0 0.0
    %1444 = vmatprep.subr.mxu0 0.0
    %1445 = vmatpush1.msra.mxu0 0.0
    %1446 = vmatprep.subr.mxu0 0.0
    %1447 = vmatpush1.msra.mxu0 0.0
    %1448 = vmatprep.subr.mxu0 0.0
    %1449 = vmatpush1.msra.mxu0 0.0
    %1450 = vmatprep.subr.mxu0 0.0
    %1451 = vmatpush1.msra.mxu0 0.0
    %1452 = vmatprep.subr.mxu0 0.0
    %1453 = vmatpush1.msra.mxu0 0.0
    %1454 = vmatprep.subr.mxu0 0.0
    %1455 = vmatpush1.msra.mxu0 0.0
    %1456 = vmatprep.subr.mxu0 0.0
    %1457 = vmatpush1.msra.mxu0 0.0
    %1458 = vmatprep.subr.mxu0 0.0
    %1459 = vmatpush1.msra.mxu0 0.0
    %1460 = vmatprep.subr.mxu0 0.0
    %1461 = vmatpush1.msra.mxu0 0.0
    %1462 = vmatprep.subr.mxu0 0.0
    %1463 = vmatpush1.msra.mxu0 0.0
    %1464 = vmatprep.subr.mxu0 0.0
    %1465 = vmatpush1.msra.mxu0 0.0
    %1466 = vmatprep.subr.mxu0 0.0
    %1467 = vmatpush1.msra.mxu0 0.0
    %1468 = vmatprep.subr.mxu0 0.0
    %1469 = vmatpush1.msra.mxu0 0.0
    %1470 = vmatprep.subr.mxu0 0.0
    %1471 = vmatpush1.msra.mxu0 0.0
    %1472 = vmatprep.subr.mxu0 0.0
    %1473 = vmatpush1.msra.mxu0 0.0
    %1474 = vmatprep.subr.mxu0 0.0
    %1475 = vmatpush1.msra.mxu0 0.0
    %1476 = vmatprep.subr.mxu0 0.0
    %1477 = vmatpush1.msra.mxu0 0.0
    %1478 = vmatprep.subr.mxu0 0.0
    %1479 = vmatpush1.msra.mxu0 0.0
    %1480 = vmatprep.subr.mxu0 0.0
    %1481 = vmatpush1.msra.mxu0 0.0
    %1482 = vmatprep.subr.mxu0 0.0
    %1483 = vmatpush1.msra.mxu0 0.0
    %1484 = vmatprep.subr.mxu0 0.0
    %1485 = vmatpush1.msra.mxu0 0.0
    %1486 = vmatprep.subr.mxu0 0.0
    %1487 = vmatpush1.msra.mxu0 0.0
    %1488 = vmatprep.subr.mxu0 0.0
    %1489 = vmatpush1.msra.mxu0 0.0
    %1490 = vmatprep.subr.mxu0 0.0
    %1491 = vmatpush1.msra.mxu0 0.0
    %1492 = vmatprep.mubr.f32.mxu0 0.0
    %1493 = vmatmul.mubr.f32.gmra.mrb[0].mxu0 %v1423
    %v1494 = vpop.f32.mrb[0].mxu0
    %v1495 = vadd.f32 0.0, %v1494
    %v1496 = vpop.f32.mrb[0].mxu0
    %1497 = vmatprep.mubr.f32.mxu0 0.0
    %1498 = vmatmul.mubr.f32.gmra.mrb[0].mxu0 %v1426
    %v1499 = vpop.f32.mrb[0].mxu0
    %v1500 = vadd.f32 0.0, %v1499
    %v1501 = vpop.f32.mrb[0].mxu0
    %1502 = vdwg.mxu0
    %s1503 = scalar_lea.vmem %s0, 16
    %v1504 = vld [vmem:[%s1503] sm:$0xff]
    %v1505 = vld [vmem:[%s1503 + $0x8] sm:$0xff]
    %1508 = vrot.lane.b32.xlu0 %v1504, 80
    %v1509 = vpop.permute.xlu0 %1508
    %1510 = vrot.lane.b32.xlu0 %v1505, 80
    %v1511 = vpop.permute.xlu0 %1510
    %v1515 = vsel %vm27, %v1410, 0
    %v1518 = vsel %vm27, %v1415, 0
    %v1521 = vsel %vm27, %v1495, 0
    %v1524 = vsel %vm27, %v1500, 0
    %1526 = vmatprep.subr.mxu0 0.0
    %1527 = vmatpush1.xpose.msra.mxu0 %v1521
    %1528 = vmatprep.subr.mxu0 0.0
    %1529 = vmatpush1.xpose.msra.mxu0 %v1524
    %1530 = vmatprep.subr.mxu0 0.0
    %1531 = vmatpush1.xpose.msra.mxu0 0.0
    %1532 = vmatprep.subr.mxu0 0.0
    %1533 = vmatpush1.xpose.msra.mxu0 0.0
    %1534 = vmatprep.subr.mxu0 0.0
    %1535 = vmatpush1.xpose.msra.mxu0 0.0
    %1536 = vmatprep.subr.mxu0 0.0
    %1537 = vmatpush1.xpose.msra.mxu0 0.0
    %1538 = vmatprep.subr.mxu0 0.0
    %1539 = vmatpush1.xpose.msra.mxu0 0.0
    %1540 = vmatprep.subr.mxu0 0.0
    %1541 = vmatpush1.xpose.msra.mxu0 0.0
    %1542 = vmatprep.subr.mxu0 0.0
    %1543 = vmatpush1.xpose.msra.mxu0 0.0
    %1544 = vmatprep.subr.mxu0 0.0
    %1545 = vmatpush1.xpose.msra.mxu0 0.0
    %1546 = vmatprep.subr.mxu0 0.0
    %1547 = vmatpush1.xpose.msra.mxu0 0.0
    %1548 = vmatprep.subr.mxu0 0.0
    %1549 = vmatpush1.xpose.msra.mxu0 0.0
    %1550 = vmatprep.subr.mxu0 0.0
    %1551 = vmatpush1.xpose.msra.mxu0 0.0
    %1552 = vmatprep.subr.mxu0 0.0
    %1553 = vmatpush1.xpose.msra.mxu0 0.0
    %1554 = vmatprep.subr.mxu0 0.0
    %1555 = vmatpush1.xpose.msra.mxu0 0.0
    %1556 = vmatprep.subr.mxu0 0.0
    %1557 = vmatpush1.xpose.msra.mxu0 0.0
    %1558 = vmatprep.subr.mxu0 0.0
    %1559 = vmatpush1.xpose.msra.mxu0 0.0
    %1560 = vmatprep.subr.mxu0 0.0
    %1561 = vmatpush1.xpose.msra.mxu0 0.0
    %1562 = vmatprep.subr.mxu0 0.0
    %1563 = vmatpush1.xpose.msra.mxu0 0.0
    %1564 = vmatprep.subr.mxu0 0.0
    %1565 = vmatpush1.xpose.msra.mxu0 0.0
    %1566 = vmatprep.subr.mxu0 0.0
    %1567 = vmatpush1.xpose.msra.mxu0 0.0
    %1568 = vmatprep.subr.mxu0 0.0
    %1569 = vmatpush1.xpose.msra.mxu0 0.0
    %1570 = vmatprep.subr.mxu0 0.0
    %1571 = vmatpush1.xpose.msra.mxu0 0.0
    %1572 = vmatprep.subr.mxu0 0.0
    %1573 = vmatpush1.xpose.msra.mxu0 0.0
    %1574 = vmatprep.subr.mxu0 0.0
    %1575 = vmatpush1.xpose.msra.mxu0 0.0
    %1576 = vmatprep.subr.mxu0 0.0
    %1577 = vmatpush1.xpose.msra.mxu0 0.0
    %1578 = vmatprep.subr.mxu0 0.0
    %1579 = vmatpush1.xpose.msra.mxu0 0.0
    %1580 = vmatprep.subr.mxu0 0.0
    %1581 = vmatpush1.xpose.msra.mxu0 0.0
    %1582 = vmatprep.subr.mxu0 0.0
    %1583 = vmatpush1.xpose.msra.mxu0 0.0
    %1584 = vmatprep.subr.mxu0 0.0
    %1585 = vmatpush1.xpose.msra.mxu0 0.0
    %1586 = vmatprep.subr.mxu0 0.0
    %1587 = vmatpush1.xpose.msra.mxu0 0.0
    %1588 = vmatprep.subr.mxu0 0.0
    %1589 = vmatpush1.xpose.msra.mxu0 0.0
    %1590 = vmatprep.mubr.f32.mxu0 0.0
    %1591 = vmatmul.mubr.f32.gmra.mrb[0].mxu0 %v1515
    %v1592 = vpop.f32.mrb[0].mxu0
    %v1593 = vadd.f32 %v1509, %v1592
    %v1594 = vpop.f32.mrb[0].mxu0
    %1595 = vmatprep.mubr.f32.mxu0 0.0
    %1596 = vmatmul.mubr.f32.gmra.mrb[0].mxu0 %v1518
    %v1597 = vpop.f32.mrb[0].mxu0
    %v1598 = vadd.f32 %v1511, %v1597
    %v1599 = vpop.f32.mrb[0].mxu0
    %1600 = vdwg.mxu0
    %v1601 = vsel %vm631, %v1593, -inf
    %1602 = vmax.xlane.f32.xlu0 %v1601
    %v1603 = vpop.xlane.xlu0 %1602
    %v1604 = vsel %vm631, %v1598, -inf
    %1605 = vmax.xlane.f32.xlu0 %v1604
    %v1606 = vpop.xlane.xlu0 %1605
    %v1607 = vsub.f32 %v1593, %v1603
    %v1608 = vsub.f32 %v1598, %v1606
    %v1609 = vmul.f32 %v1607, 1.442695
    %v1610 = vpow.pop %v1609
    %v1611 = vmul.f32 %v1608, 1.442695
    %v1612 = vpow.pop %v1611
    %v1613 = vsel %vm631, %v1610, 0.0
    %1614 = vadd.xlane.f32.xlu0 %v1613
    %v1615 = vpop.xlane.xlu0 %1614
    %v1616 = vsel %vm631, %v1612, 0.0
    %1617 = vadd.xlane.f32.xlu0 %v1616
    %v1618 = vpop.xlane.xlu0 %1617
    %v1619 = vrcp.pop %v1615
    %v1620 = vrcp.pop %v1618
    %v1621 = vmul.f32 %v1610, %v1619
    %v1622 = vmul.f32 %v1612, %v1620
    %1623 = vrot.lane.b32.xlu0 %v1495, 96
    %v1624 = vpop.permute.xlu0 %1623
    %1625 = vrot.lane.b32.xlu0 %v1500, 96
    %v1626 = vpop.permute.xlu0 %1625
    %v1630 = vsel %vm631, %v1621, 0
    %v1633 = vsel %vm631, %v1622, 0
    %1635 = vmatprep.subr.mxu0 0.0
    %1636 = vmatpush1.msra.mxu0 %v1624
    %1637 = vmatprep.subr.mxu0 0.0
    %1638 = vmatpush1.msra.mxu0 %v1626
    %1639 = vmatprep.subr.mxu0 0.0
    %1640 = vmatpush1.msra.mxu0 0.0
    %1641 = vmatprep.subr.mxu0 0.0
    %1642 = vmatpush1.msra.mxu0 0.0
    %1643 = vmatprep.subr.mxu0 0.0
    %1644 = vmatpush1.msra.mxu0 0.0
    %1645 = vmatprep.subr.mxu0 0.0
    %1646 = vmatpush1.msra.mxu0 0.0
    %1647 = vmatprep.subr.mxu0 0.0
    %1648 = vmatpush1.msra.mxu0 0.0
    %1649 = vmatprep.subr.mxu0 0.0
    %1650 = vmatpush1.msra.mxu0 0.0
    %1651 = vmatprep.subr.mxu0 0.0
    %1652 = vmatpush1.msra.mxu0 0.0
    %1653 = vmatprep.subr.mxu0 0.0
    %1654 = vmatpush1.msra.mxu0 0.0
    %1655 = vmatprep.subr.mxu0 0.0
    %1656 = vmatpush1.msra.mxu0 0.0
    %1657 = vmatprep.subr.mxu0 0.0
    %1658 = vmatpush1.msra.mxu0 0.0
    %1659 = vmatprep.subr.mxu0 0.0
    %1660 = vmatpush1.msra.mxu0 0.0
    %1661 = vmatprep.subr.mxu0 0.0
    %1662 = vmatpush1.msra.mxu0 0.0
    %1663 = vmatprep.subr.mxu0 0.0
    %1664 = vmatpush1.msra.mxu0 0.0
    %1665 = vmatprep.subr.mxu0 0.0
    %1666 = vmatpush1.msra.mxu0 0.0
    %1667 = vmatprep.subr.mxu0 0.0
    %1668 = vmatpush1.msra.mxu0 0.0
    %1669 = vmatprep.subr.mxu0 0.0
    %1670 = vmatpush1.msra.mxu0 0.0
    %1671 = vmatprep.subr.mxu0 0.0
    %1672 = vmatpush1.msra.mxu0 0.0
    %1673 = vmatprep.subr.mxu0 0.0
    %1674 = vmatpush1.msra.mxu0 0.0
    %1675 = vmatprep.subr.mxu0 0.0
    %1676 = vmatpush1.msra.mxu0 0.0
    %1677 = vmatprep.subr.mxu0 0.0
    %1678 = vmatpush1.msra.mxu0 0.0
    %1679 = vmatprep.subr.mxu0 0.0
    %1680 = vmatpush1.msra.mxu0 0.0
    %1681 = vmatprep.subr.mxu0 0.0
    %1682 = vmatpush1.msra.mxu0 0.0
    %1683 = vmatprep.subr.mxu0 0.0
    %1684 = vmatpush1.msra.mxu0 0.0
    %1685 = vmatprep.subr.mxu0 0.0
    %1686 = vmatpush1.msra.mxu0 0.0
    %1687 = vmatprep.subr.mxu0 0.0
    %1688 = vmatpush1.msra.mxu0 0.0
    %1689 = vmatprep.subr.mxu0 0.0
    %1690 = vmatpush1.msra.mxu0 0.0
    %1691 = vmatprep.subr.mxu0 0.0
    %1692 = vmatpush1.msra.mxu0 0.0
    %1693 = vmatprep.subr.mxu0 0.0
    %1694 = vmatpush1.msra.mxu0 0.0
    %1695 = vmatprep.subr.mxu0 0.0
    %1696 = vmatpush1.msra.mxu0 0.0
    %1697 = vmatprep.subr.mxu0 0.0
    %1698 = vmatpush1.msra.mxu0 0.0
    %1699 = vmatprep.mubr.f32.mxu0 0.0
    %1700 = vmatmul.mubr.f32.gmra.mrb[0].mxu0 %v1630
    %v1701 = vpop.f32.mrb[0].mxu0
    %v1702 = vadd.f32 0.0, %v1701
    %v1703 = vpop.f32.mrb[0].mxu0
    %1704 = vmatprep.mubr.f32.mxu0 0.0
    %1705 = vmatmul.mubr.f32.gmra.mrb[0].mxu0 %v1633
    %v1706 = vpop.f32.mrb[0].mxu0
    %v1707 = vadd.f32 0.0, %v1706
    %v1708 = vpop.f32.mrb[0].mxu0
    %1709 = vdwg.mxu0
    %v1710 = vld [vmem:[%s2 + $0x40] sm:$0xff]
    %v1711 = vld [vmem:[%s2 + $0x48] sm:$0xff]
    %v1712 = vld [vmem:[%s2 + $0x50] sm:$0xff]
    %v1713 = vld [vmem:[%s2 + $0x58] sm:$0xff]
    %v1715 = vsel %vm27, %v1702, 0
    %v1718 = vsel %vm27, %v1707, 0
    %1720 = vmatprep.subr.mxu0 0.0
    %1721 = vmatpush1.msra.mxu0 %v1710
    %1722 = vmatprep.subr.mxu0 0.0
    %1723 = vmatpush1.msra.mxu0 %v1711
    %1724 = vmatprep.subr.mxu0 0.0
    %1725 = vmatpush1.msra.mxu0 %v1712
    %1726 = vmatprep.subr.mxu0 0.0
    %1727 = vmatpush1.msra.mxu0 %v1713
    %1728 = vmatprep.subr.mxu0 0.0
    %1729 = vmatpush1.msra.mxu0 0.0
    %1730 = vmatprep.subr.mxu0 0.0
    %1731 = vmatpush1.msra.mxu0 0.0
    %1732 = vmatprep.subr.mxu0 0.0
    %1733 = vmatpush1.msra.mxu0 0.0
    %1734 = vmatprep.subr.mxu0 0.0
    %1735 = vmatpush1.msra.mxu0 0.0
    %1736 = vmatprep.subr.mxu0 0.0
    %1737 = vmatpush1.msra.mxu0 0.0
    %1738 = vmatprep.subr.mxu0 0.0
    %1739 = vmatpush1.msra.mxu0 0.0
    %1740 = vmatprep.subr.mxu0 0.0
    %1741 = vmatpush1.msra.mxu0 0.0
    %1742 = vmatprep.subr.mxu0 0.0
    %1743 = vmatpush1.msra.mxu0 0.0
    %1744 = vmatprep.subr.mxu0 0.0
    %1745 = vmatpush1.msra.mxu0 0.0
    %1746 = vmatprep.subr.mxu0 0.0
    %1747 = vmatpush1.msra.mxu0 0.0
    %1748 = vmatprep.subr.mxu0 0.0
    %1749 = vmatpush1.msra.mxu0 0.0
    %1750 = vmatprep.subr.mxu0 0.0
    %1751 = vmatpush1.msra.mxu0 0.0
    %1752 = vmatprep.subr.mxu0 0.0
    %1753 = vmatpush1.msra.mxu0 0.0
    %1754 = vmatprep.subr.mxu0 0.0
    %1755 = vmatpush1.msra.mxu0 0.0
    %1756 = vmatprep.subr.mxu0 0.0
    %1757 = vmatpush1.msra.mxu0 0.0
    %1758 = vmatprep.subr.mxu0 0.0
    %1759 = vmatpush1.msra.mxu0 0.0
    %1760 = vmatprep.subr.mxu0 0.0
    %1761 = vmatpush1.msra.mxu0 0.0
    %1762 = vmatprep.subr.mxu0 0.0
    %1763 = vmatpush1.msra.mxu0 0.0
    %1764 = vmatprep.subr.mxu0 0.0
    %1765 = vmatpush1.msra.mxu0 0.0
    %1766 = vmatprep.subr.mxu0 0.0
    %1767 = vmatpush1.msra.mxu0 0.0
    %1768 = vmatprep.subr.mxu0 0.0
    %1769 = vmatpush1.msra.mxu0 0.0
    %1770 = vmatprep.subr.mxu0 0.0
    %1771 = vmatpush1.msra.mxu0 0.0
    %1772 = vmatprep.subr.mxu0 0.0
    %1773 = vmatpush1.msra.mxu0 0.0
    %1774 = vmatprep.subr.mxu0 0.0
    %1775 = vmatpush1.msra.mxu0 0.0
    %1776 = vmatprep.subr.mxu0 0.0
    %1777 = vmatpush1.msra.mxu0 0.0
    %1778 = vmatprep.subr.mxu0 0.0
    %1779 = vmatpush1.msra.mxu0 0.0
    %1780 = vmatprep.subr.mxu0 0.0
    %1781 = vmatpush1.msra.mxu0 0.0
    %1782 = vmatprep.subr.mxu0 0.0
    %1783 = vmatpush1.msra.mxu0 0.0
    %1784 = vmatprep.mubr.f32.mxu0 0.0
    %1785 = vmatmul.mubr.f32.gmra.mrb[0].mxu0 %v1715
    %v1786 = vpop.f32.mrb[0].mxu0
    %v1787 = vadd.f32 0.0, %v1786
    %v1788 = vpop.f32.mrb[0].mxu0
    %1789 = vmatprep.mubr.f32.mxu0 0.0
    %1790 = vmatmul.mubr.f32.gmra.mrb[0].mxu0 %v1718
    %v1791 = vpop.f32.mrb[0].mxu0
    %v1792 = vadd.f32 0.0, %v1791
    %v1793 = vpop.f32.mrb[0].mxu0
    %1794 = vdwg.mxu0
    %v1795 = vadd.f32 %v1022, %v1787
    %v1796 = vadd.f32 %v1023, %v1792
    %s1797 = scalar_lea.vmem %s1, 200
    %v1798 = vld [vmem:[%s1797 + $0xc4] sm:$0x1]
    %v1799 = vld [vmem:[%s1797 + $0xc5] sm:$0x1]
    %v1800 = vsel %vm27, %v1795, 0.0
    %1801 = vadd.xlane.f32.xlu0 %v1800
    %v1802 = vpop.xlane.xlu0 %1801
    %v1803 = vsel %vm27, %v1796, 0.0
    %1804 = vadd.xlane.f32.xlu0 %v1803
    %v1805 = vpop.xlane.xlu0 %1804
    %v1806 = vmul.f32 %v1802, %v206
    %v1807 = vmul.f32 %v1805, %v206
    %v1808 = vsub.f32 %v1795, %v1806
    %v1809 = vsub.f32 %v1796, %v1807
    %v1810 = vmul.f32 %v1808, %v1808
    %v1811 = vmul.f32 %v1809, %v1809
    %v1812 = vsel %vm27, %v1810, 0.0
    %1813 = vadd.xlane.f32.xlu0 %v1812
    %v1814 = vpop.xlane.xlu0 %1813
    %v1815 = vsel %vm27, %v1811, 0.0
    %1816 = vadd.xlane.f32.xlu0 %v1815
    %v1817 = vpop.xlane.xlu0 %1816
    %v1818 = vmul.f32 %v1814, %v206
    %v1819 = vmul.f32 %v1817, %v206
    %v1820 = vlaneseq
    %v1821 = vshrl.u32 %v1820, 7
    %v1822 = vsub.s32 0, %v1821
    %v1823 = vrot.slane %v1798, %v1822
    %v1824 = vmul.f32 %v1823, %v1808
    %v1825 = vmul.f32 %v1823, %v1809
    %v1826 = vadd.f32 %v1818, 1e-06
    %v1827 = vadd.f32 %v1819, 1e-06
    %v1828 = vrsqrt.pop %v1826
    %v1829 = vrsqrt.pop %v1827
    %v1830 = vmul.f32 %v1824, %v1828
    %v1831 = vmul.f32 %v1825, %v1829
    %v1832 = vlaneseq
    %v1833 = vshrl.u32 %v1832, 7
    %v1834 = vsub.s32 0, %v1833
    %v1835 = vrot.slane %v1799, %v1834
    %v1836 = vadd.f32 %v1830, %v1835
    %v1837 = vadd.f32 %v1831, %v1835
    %v1838 = vld [vmem:[%s1797 + $0x60] sm:$0xff]
    %v1839 = vld [vmem:[%s1797 + $0x68] sm:$0xff]
    %v1840 = vld [vmem:[%s1797 + $0x70] sm:$0xff]
    %v1841 = vld [vmem:[%s1797 + $0x78] sm:$0xff]
    %v1842 = vld [vmem:[%s1797 + $0xc0] sm:$0x1]
    %v1843 = vld [vmem:[%s1797 + $0x80] sm:$0xff]
    %v1844 = vld [vmem:[%s1797 + $0x88] sm:$0xff]
    %v1845 = vld [vmem:[%s1797 + $0x90] sm:$0xff]
    %v1846 = vld [vmem:[%s1797 + $0x98] sm:$0xff]
    %v1847 = vld [vmem:[%s1797 + $0xa0] sm:$0xff]
    %v1848 = vld [vmem:[%s1797 + $0xa8] sm:$0xff]
    %v1849 = vld [vmem:[%s1797 + $0xb0] sm:$0xff]
    %v1850 = vld [vmem:[%s1797 + $0xb8] sm:$0xff]
    %v1851 = vld [vmem:[%s1797 + $0xc1] sm:$0x1]
    %v1852 = vlaneseq
    %v1853 = vshrl.u32 %v1852, 7
    %v1854 = vsub.s32 0, %v1853
    %v1855 = vrot.slane %v1842, %v1854
    %v1857 = vsel %vm27, %v1836, 0
    %v1860 = vsel %vm27, %v1837, 0
    %1862 = vmatprep.subr.mxu0 0.0
    %1863 = vmatpush1.msra.mxu0 %v1838
    %1864 = vmatprep.subr.mxu0 0.0
    %1865 = vmatpush1.msra.mxu0 %v1839
    %1866 = vmatprep.subr.mxu0 0.0
    %1867 = vmatpush1.msra.mxu0 %v1840
    %1868 = vmatprep.subr.mxu0 0.0
    %1869 = vmatpush1.msra.mxu0 %v1841
    %1870 = vmatprep.subr.mxu0 0.0
    %1871 = vmatpush1.msra.mxu0 0.0
    %1872 = vmatprep.subr.mxu0 0.0
    %1873 = vmatpush1.msra.mxu0 0.0
    %1874 = vmatprep.subr.mxu0 0.0
    %1875 = vmatpush1.msra.mxu0 0.0
    %1876 = vmatprep.subr.mxu0 0.0
    %1877 = vmatpush1.msra.mxu0 0.0
    %1878 = vmatprep.subr.mxu0 0.0
    %1879 = vmatpush1.msra.mxu0 0.0
    %1880 = vmatprep.subr.mxu0 0.0
    %1881 = vmatpush1.msra.mxu0 0.0
    %1882 = vmatprep.subr.mxu0 0.0
    %1883 = vmatpush1.msra.mxu0 0.0
    %1884 = vmatprep.subr.mxu0 0.0
    %1885 = vmatpush1.msra.mxu0 0.0
    %1886 = vmatprep.subr.mxu0 0.0
    %1887 = vmatpush1.msra.mxu0 0.0
    %1888 = vmatprep.subr.mxu0 0.0
    %1889 = vmatpush1.msra.mxu0 0.0
    %1890 = vmatprep.subr.mxu0 0.0
    %1891 = vmatpush1.msra.mxu0 0.0
    %1892 = vmatprep.subr.mxu0 0.0
    %1893 = vmatpush1.msra.mxu0 0.0
    %1894 = vmatprep.subr.mxu0 0.0
    %1895 = vmatpush1.msra.mxu0 0.0
    %1896 = vmatprep.subr.mxu0 0.0
    %1897 = vmatpush1.msra.mxu0 0.0
    %1898 = vmatprep.subr.mxu0 0.0
    %1899 = vmatpush1.msra.mxu0 0.0
    %1900 = vmatprep.subr.mxu0 0.0
    %1901 = vmatpush1.msra.mxu0 0.0
    %1902 = vmatprep.subr.mxu0 0.0
    %1903 = vmatpush1.msra.mxu0 0.0
    %1904 = vmatprep.subr.mxu0 0.0
    %1905 = vmatpush1.msra.mxu0 0.0
    %1906 = vmatprep.subr.mxu0 0.0
    %1907 = vmatpush1.msra.mxu0 0.0
    %1908 = vmatprep.subr.mxu0 0.0
    %1909 = vmatpush1.msra.mxu0 0.0
    %1910 = vmatprep.subr.mxu0 0.0
    %1911 = vmatpush1.msra.mxu0 0.0
    %1912 = vmatprep.subr.mxu0 0.0
    %1913 = vmatpush1.msra.mxu0 0.0
    %1914 = vmatprep.subr.mxu0 0.0
    %1915 = vmatpush1.msra.mxu0 0.0
    %1916 = vmatprep.subr.mxu0 0.0
    %1917 = vmatpush1.msra.mxu0 0.0
    %1918 = vmatprep.subr.mxu0 0.0
    %1919 = vmatpush1.msra.mxu0 0.0
    %1920 = vmatprep.subr.mxu0 0.0
    %1921 = vmatpush1.msra.mxu0 0.0
    %1922 = vmatprep.subr.mxu0 0.0
    %1923 = vmatpush1.msra.mxu0 0.0
    %1924 = vmatprep.subr.mxu0 0.0
    %1925 = vmatpush1.msra.mxu0 0.0
    %1926 = vmatprep.mubr.f32.mxu0 0.0
    %1927 = vmatmul.mubr.f32.gmra.mrb[0].mxu0 %v1857
    %v1928 = vpop.f32.mrb[0].mxu0
    %v1929 = vadd.f32 %v1855, %v1928
    %v1930 = vpop.f32.mrb[0].mxu0
    %1931 = vmatprep.mubr.f32.mxu0 0.0
    %1932 = vmatmul.mubr.f32.gmra.mrb[0].mxu0 %v1860
    %v1933 = vpop.f32.mrb[0].mxu0
    %v1934 = vadd.f32 %v1855, %v1933
    %v1935 = vpop.f32.mrb[0].mxu0
    %1936 = vdwg.mxu0
    %v1937 = vmax.f32 %v1929, 0.0
    %v1938 = vmax.f32 %v1934, 0.0
    %v1939 = vlaneseq
    %v1940 = vshrl.u32 %v1939, 7
    %v1941 = vsub.s32 0, %v1940
    %v1942 = vrot.slane %v1851, %v1941
    %v1944 = vsel %vm1169, %v1937, 0
    %v1947 = vsel %vm1169, %v1938, 0
    %1949 = vmatprep.subr.mxu0 0.0
    %1950 = vmatpush1.msra.mxu0 %v1843
    %1951 = vmatprep.subr.mxu0 0.0
    %1952 = vmatpush1.msra.mxu0 %v1844
    %1953 = vmatprep.subr.mxu0 0.0
    %1954 = vmatpush1.msra.mxu0 %v1845
    %1955 = vmatprep.subr.mxu0 0.0
    %1956 = vmatpush1.msra.mxu0 %v1846
    %1957 = vmatprep.subr.mxu0 0.0
    %1958 = vmatpush1.msra.mxu0 %v1847
    %1959 = vmatprep.subr.mxu0 0.0
    %1960 = vmatpush1.msra.mxu0 %v1848
    %1961 = vmatprep.subr.mxu0 0.0
    %1962 = vmatpush1.msra.mxu0 %v1849
    %1963 = vmatprep.subr.mxu0 0.0
    %1964 = vmatpush1.msra.mxu0 %v1850
    %1965 = vmatprep.subr.mxu0 0.0
    %1966 = vmatpush1.msra.mxu0 0.0
    %1967 = vmatprep.subr.mxu0 0.0
    %1968 = vmatpush1.msra.mxu0 0.0
    %1969 = vmatprep.subr.mxu0 0.0
    %1970 = vmatpush1.msra.mxu0 0.0
    %1971 = vmatprep.subr.mxu0 0.0
    %1972 = vmatpush1.msra.mxu0 0.0
    %1973 = vmatprep.subr.mxu0 0.0
    %1974 = vmatpush1.msra.mxu0 0.0
    %1975 = vmatprep.subr.mxu0 0.0
    %1976 = vmatpush1.msra.mxu0 0.0
    %1977 = vmatprep.subr.mxu0 0.0
    %1978 = vmatpush1.msra.mxu0 0.0
    %1979 = vmatprep.subr.mxu0 0.0
    %1980 = vmatpush1.msra.mxu0 0.0
    %1981 = vmatprep.subr.mxu0 0.0
    %1982 = vmatpush1.msra.mxu0 0.0
    %1983 = vmatprep.subr.mxu0 0.0
    %1984 = vmatpush1.msra.mxu0 0.0
    %1985 = vmatprep.subr.mxu0 0.0
    %1986 = vmatpush1.msra.mxu0 0.0
    %1987 = vmatprep.subr.mxu0 0.0
    %1988 = vmatpush1.msra.mxu0 0.0
    %1989 = vmatprep.subr.mxu0 0.0
    %1990 = vmatpush1.msra.mxu0 0.0
    %1991 = vmatprep.subr.mxu0 0.0
    %1992 = vmatpush1.msra.mxu0 0.0
    %1993 = vmatprep.subr.mxu0 0.0
    %1994 = vmatpush1.msra.mxu0 0.0
    %1995 = vmatprep.subr.mxu0 0.0
    %1996 = vmatpush1.msra.mxu0 0.0
    %1997 = vmatprep.subr.mxu0 0.0
    %1998 = vmatpush1.msra.mxu0 0.0
    %1999 = vmatprep.subr.mxu0 0.0
    %2000 = vmatpush1.msra.mxu0 0.0
    %2001 = vmatprep.subr.mxu0 0.0
    %2002 = vmatpush1.msra.mxu0 0.0
    %2003 = vmatprep.subr.mxu0 0.0
    %2004 = vmatpush1.msra.mxu0 0.0
    %2005 = vmatprep.subr.mxu0 0.0
    %2006 = vmatpush1.msra.mxu0 0.0
    %2007 = vmatprep.subr.mxu0 0.0
    %2008 = vmatpush1.msra.mxu0 0.0
    %2009 = vmatprep.subr.mxu0 0.0
    %2010 = vmatpush1.msra.mxu0 0.0
    %2011 = vmatprep.subr.mxu0 0.0
    %2012 = vmatpush1.msra.mxu0 0.0
    %2013 = vmatprep.mubr.f32.mxu0 0.0
    %2014 = vmatmul.mubr.f32.gmra.mrb[0].mxu0 %v1944
    %v2015 = vpop.f32.mrb[0].mxu0
    %v2016 = vadd.f32 %v1942, %v2015
    %v2017 = vpop.f32.mrb[0].mxu0
    %2018 = vmatprep.mubr.f32.mxu0 0.0
    %2019 = vmatmul.mubr.f32.gmra.mrb[0].mxu0 %v1947
    %v2020 = vpop.f32.mrb[0].mxu0
    %v2021 = vadd.f32 %v1942, %v2020
    %v2022 = vpop.f32.mrb[0].mxu0
    %2023 = vdwg.mxu0
    %v2024 = vadd.f32 %v1795, %v2016
    %v2025 = vadd.f32 %v1796, %v2021
    %v2026 = vld [vmem:[%s1797 + $0xc6] sm:$0x1]
    %v2027 = vld [vmem:[%s1797 + $0xc7] sm:$0x1]
    %v2028 = vsel %vm27, %v2024, 0.0
    %2029 = vadd.xlane.f32.xlu0 %v2028
    %v2030 = vpop.xlane.xlu0 %2029
    %v2031 = vsel %vm27, %v2025, 0.0
    %2032 = vadd.xlane.f32.xlu0 %v2031
    %v2033 = vpop.xlane.xlu0 %2032
    %v2034 = vmul.f32 %v2030, %v206
    %v2035 = vmul.f32 %v2033, %v206
    %v2036 = vsub.f32 %v2024, %v2034
    %v2037 = vsub.f32 %v2025, %v2035
    %v2038 = vmul.f32 %v2036, %v2036
    %v2039 = vmul.f32 %v2037, %v2037
    %v2040 = vsel %vm27, %v2038, 0.0
    %2041 = vadd.xlane.f32.xlu0 %v2040
    %v2042 = vpop.xlane.xlu0 %2041
    %v2043 = vsel %vm27, %v2039, 0.0
    %2044 = vadd.xlane.f32.xlu0 %v2043
    %v2045 = vpop.xlane.xlu0 %2044
    %v2046 = vmul.f32 %v2042, %v206
    %v2047 = vmul.f32 %v2045, %v206
    %v2048 = vlaneseq
    %v2049 = vshrl.u32 %v2048, 7
    %v2050 = vsub.s32 0, %v2049
    %v2051 = vrot.slane %v2026, %v2050
    %v2052 = vmul.f32 %v2051, %v2036
    %v2053 = vmul.f32 %v2051, %v2037
    %v2054 = vadd.f32 %v2046, 1e-06
    %v2055 = vadd.f32 %v2047, 1e-06
    %v2056 = vrsqrt.pop %v2054
    %v2057 = vrsqrt.pop %v2055
    %v2058 = vmul.f32 %v2052, %v2056
    %v2059 = vmul.f32 %v2053, %v2057
    %v2060 = vlaneseq
    %v2061 = vshrl.u32 %v2060, 7
    %v2062 = vsub.s32 0, %v2061
    %v2063 = vrot.slane %v2027, %v2062
    %v2064 = vadd.f32 %v2058, %v2063
    %v2065 = vadd.f32 %v2059, %v2063
    %2066 = vst.msk [vmem:[#allocation2] sm:$0xff] %vm27, %v2064
    %2067 = vst.msk [vmem:[#allocation2 + $0x8] sm:$0xff] %vm27, %v2065
    // Predicated region
    $region14: #{tpu_custom_call.1} parent=1 // pred_check
      _
    $region15: #{tpu_custom_call.1} parent=1 // pred_check_branch
      %2069 = sbr.rel (0) target = $region17
    $region16: #{tpu_custom_call.1} parent=1 // pred_region
      %s2071 = ssub.s32 256, 256
      %2072 = vsyncadd [#allocation3], %s2071
      %s2073 = sshll.u32 [#allocation2], 4
      %s2074 = int_to_ptr.vmem [resolvable:$true] %s2073
      %2079 = dma.vmem_to_hbm [thread:$0]  %s2074, 256, %s3, [#allocation3], 128, 128, 8
    $region17: #{tpu_custom_call.1} parent=1 // pred_fallthru
      _
    // Predicated region
    $region18: #{tpu_custom_call.1} parent=1 // pred_check
      _
    $region19: #{tpu_custom_call.1} parent=1 // pred_check_branch
      %2081 = sbr.rel (0) target = $region21
    $region20: #{tpu_custom_call.1} parent=1 // pred_region
      %2082 = dma.done [#allocation3], 256
    $region21: #{tpu_custom_call.1} parent=1 // pred_fallthru
      _
    %2083 = vsyncpa [#allocation3], 1

</llo_original>
